<compile_context>
chip_gen: v7x
topology: tpu7x:2x2x1
jax: 0.10.0
libtpu: 0.0.40
codegen_flags: <defaults>
</compile_context>

<pallas_src>
import jax
import jax.numpy as jnp
import numpy as np
from jax.experimental import pallas as pl
from jax.experimental.pallas import tpu as pltpu

LOG_STD_MIN = -20.0
LOG_STD_MAX = 2.0


# ----------------------------------------------------------------------------
# In-kernel helpers
# ----------------------------------------------------------------------------
def _conv1d_k3_relu(x, w_ref, b_ref, m_lo, m_hi):
    """Conv1d(kernel=3, stride=1, padding=1) + ReLU on a batch-major slab.

    x:      (n, C_in)  f32, rows ordered (batch, length)
    w_ref:  (3, C_in, C_out) ref (per-tap weights, tap k multiplies x[l+k-1])
    b_ref:  (1, C_out) ref
    m_lo:   (n, 1) f32 mask, 0 where length-pos == 0      (tap k=0 invalid)
    m_hi:   (n, 1) f32 mask, 0 where length-pos == L - 1  (tap k=2 invalid)
    """
    n = x.shape[0]
    xw0 = jnp.dot(x, w_ref[0], preferred_element_type=jnp.float32)
    xw1 = jnp.dot(x, w_ref[1], preferred_element_type=jnp.float32)
    xw2 = jnp.dot(x, w_ref[2], preferred_element_type=jnp.float32)
    # tap k contributes (x @ W_k) shifted so row i picks source row i + (k-1);
    # roll wrap-around rows are exactly the zero-padding rows -> masked to 0.
    acc = (xw1
           + m_lo * pltpu.roll(xw0, shift=1, axis=0)
           + m_hi * pltpu.roll(xw2, shift=n - 1, axis=0))
    return jnp.maximum(acc + b_ref[...], 0.0)


def _actor_kernel(market_ref, port_ref, masks_ref,
                  w1_ref, b1_ref, w2_ref, b2_ref, w3_ref, b3_ref,
                  wc_ref, wp_ref, pw_ref, pb_ref, fc1b_ref,
                  fc2w_ref, fc2b_ref, hw_ref, hb_ref,
                  out_ref,
                  s1, s2, s3, sflat):
    f32 = jnp.float32
    bf16 = jnp.bfloat16

    n1 = s1.shape[0]            # TILE_B * W
    n2 = s2.shape[0]            # TILE_B * W//2
    n3 = s3.shape[0]            # TILE_B * W//4
    tb = sflat.shape[0]         # TILE_B
    w4 = n3 // tb               # W//4
    a2 = out_ref.shape[1]       # 2 * action_dim
    a = a2 // 2

    # ---- conv1 -> relu -> pool ------------------------------------------
    x = market_ref[...]                                        # (n1, F) f32
    s1[...] = _conv1d_k3_relu(x, w1_ref, b1_ref,
                              masks_ref[0:n1, 0:1], masks_ref[0:n1, 1:2])
    p1 = jnp.maximum(s1[pl.ds(0, n2, stride=2), :],            # even rows
                     s1[pl.ds(1, n2, stride=2), :])            # odd rows

    # ---- conv2 -> relu -> pool ------------------------------------------
    s2[...] = _conv1d_k3_relu(p1, w2_ref, b2_ref,
                              masks_ref[0:n2, 2:3], masks_ref[0:n2, 3:4])
    p2 = jnp.maximum(s2[pl.ds(0, n3, stride=2), :],
                     s2[pl.ds(1, n3, stride=2), :])

    # ---- conv3 -> relu ----------------------------------------------------
    s3[...] = _conv1d_k3_relu(p2, w3_ref, b3_ref,
                              masks_ref[0:n3, 4:5], masks_ref[0:n3, 5:6])

    # ---- flatten conv features per batch element --------------------------
    # s3 row b*w4 + l  ->  sflat[b, l*128 + c]  (wc rows are pre-permuted to
    # this (l, c) order so the PyTorch channel-major flatten is reproduced).
    for l in range(w4):
        sflat[:, l * 128:(l + 1) * 128] = s3[pl.ds(l, tb, stride=w4), :]

    # ---- portfolio branch --------------------------------------------------
    pfeat = jnp.maximum(
        jnp.dot(port_ref[...], pw_ref[...], preferred_element_type=f32)
        + pb_ref[...], 0.0)                                    # (tb, hid4)

    # ---- fc1 / fc2 / heads (batched MXU matmuls, bf16 operands, f32 acc) ---
    conv_feat = jnp.dot(sflat[...].astype(bf16), wc_ref[...],
                        preferred_element_type=f32)            # (tb, H)
    h1 = jnp.maximum(
        conv_feat
        + jnp.dot(pfeat.astype(bf16), wp_ref[...], preferred_element_type=f32)
        + fc1b_ref[...], 0.0)
    h2 = jnp.maximum(
        jnp.dot(h1.astype(bf16), fc2w_ref[...], preferred_element_type=f32)
        + fc2b_ref[...], 0.0)
    heads = jnp.dot(h2.astype(bf16), hw_ref[...],
                    preferred_element_type=f32) + hb_ref[...]  # (tb, 2A)

    out_ref[:, 0:a] = heads[:, 0:a]                            # mean
    out_ref[:, a:a2] = jnp.clip(heads[:, a:a2], LOG_STD_MIN, LOG_STD_MAX)


# ----------------------------------------------------------------------------
# Wrapper: parameter re-layout (glue) + pallas_call
# ----------------------------------------------------------------------------
def _boundary_masks(tile_b, window):
    """(tile_b*window, 6) f32: per-layer (lo, hi) zero-padding masks."""
    n1 = tile_b * window
    m = np.ones((n1, 6), np.float32)
    for li, length in enumerate((window, window // 2, window // 4)):
        n = tile_b * length
        l_idx = np.arange(n) % length
        m[:n, 2 * li][l_idx == 0] = 0.0
        m[:n, 2 * li + 1][l_idx == length - 1] = 0.0
    return jnp.asarray(m)


def cnn_actor_forward(market, portfolio, params, *, tile_b=8):
    B, W, F = market.shape
    assert W % 4 == 0, "window_size must be divisible by 4 (two 2x pools)"
    hidden = params["fc1_w"].shape[0]
    hid4 = params["pfc_w"].shape[0]
    A = params["mean_w"].shape[0]
    W2, W4 = W // 2, W // 4
    conv_out = 128 * W4
    f32, bf16 = jnp.float32, jnp.bfloat16

    # --- batch tiling / padding ------------------------------------------
    TB = tile_b
    B_pad = ((B + TB - 1) // TB) * TB
    if B_pad != B:
        market = jnp.pad(market, ((0, B_pad - B), (0, 0), (0, 0)))
        portfolio = jnp.pad(portfolio, ((0, B_pad - B), (0, 0)))
    market2d = market.reshape(B_pad * W, F).astype(f32)   # rows = (batch, time)
    port = portfolio.astype(f32)

    masks = _boundary_masks(TB, W)

    # --- conv weights: (O, C, 3) -> per-tap (3, C, O), f32 (tiny, small K) --
    w1 = jnp.transpose(params["conv1_w"], (2, 1, 0)).astype(f32)   # (3, F, 32)
    w2 = jnp.transpose(params["conv2_w"], (2, 1, 0)).astype(f32)   # (3, 32, 64)
    w3 = jnp.transpose(params["conv3_w"], (2, 1, 0)).astype(f32)   # (3, 64, 128)
    b1 = params["conv1_b"].reshape(1, -1).astype(f32)
    b2 = params["conv2_b"].reshape(1, -1).astype(f32)
    b3 = params["conv3_b"].reshape(1, -1).astype(f32)

    # --- fc1: conv part permuted to kernel-side (l, c) flatten order --------
    fc1_w = params["fc1_w"].astype(f32)                            # (H, conv_out + hid4)
    wc = fc1_w[:, :conv_out].reshape(hidden, 128, W4)              # [h, c, l]
    wc = jnp.transpose(wc, (2, 1, 0)).reshape(W4 * 128, hidden)    # row = l*128 + c
    wc = wc.astype(bf16)
    wp = fc1_w[:, conv_out:].T.astype(bf16)                        # (hid4, H)
    fc1_b = params["fc1_b"].reshape(1, -1).astype(f32)

    pw = params["pfc_w"].T.astype(f32)                             # (2, hid4)
    pb = params["pfc_b"].reshape(1, -1).astype(f32)
    fc2w = params["fc2_w"].T.astype(bf16)                          # (H, H)
    fc2b = params["fc2_b"].reshape(1, -1).astype(f32)

    # --- fused mean / log_std head ------------------------------------------
    hw = jnp.concatenate([params["mean_w"].T, params["ls_w"].T], axis=1).astype(bf16)  # (H, 2A)
    hb = jnp.concatenate([params["mean_b"], params["ls_b"]]).reshape(1, -1).astype(f32)

    full = lambda arr: pl.BlockSpec(arr.shape, lambda t, _nd=arr.ndim: (0,) * _nd)

    in_specs = [
        pl.BlockSpec((TB * W, F), lambda t: (t, 0)),   # market (batch tile)
        pl.BlockSpec((TB, 2), lambda t: (t, 0)),       # portfolio
        full(masks),
        full(w1), full(b1), full(w2), full(b2), full(w3), full(b3),
        full(wc), full(wp), full(pw), full(pb), full(fc1_b),
        full(fc2w), full(fc2b), full(hw), full(hb),
    ]
    out_specs = pl.BlockSpec((TB, 2 * A), lambda t: (t, 0))
    out_shape = jax.ShapeDtypeStruct((B_pad, 2 * A), f32)

    scratch_shapes = [
        pltpu.VMEM((TB * W, 32), f32),        # conv1 output (pool source)
        pltpu.VMEM((TB * W2, 64), f32),       # conv2 output (pool source)
        pltpu.VMEM((TB * W4, 128), f32),      # conv3 output (flatten source)
        pltpu.VMEM((TB, conv_out), f32),      # flattened conv features
    ]

    out = pl.pallas_call(
        _actor_kernel,
        out_shape=out_shape,
        grid_spec=pltpu.PrefetchScalarGridSpec(
            num_scalar_prefetch=0,
            grid=(B_pad // TB,),
            in_specs=in_specs,
            out_specs=out_specs,
            scratch_shapes=scratch_shapes,
        ),
        compiler_params=pltpu.CompilerParams(
            dimension_semantics=("parallel",)),
    )(market2d, port, masks, w1, b1, w2, b2, w3, b3,
      wc, wp, pw, pb, fc1_b, fc2w, fc2b, hw, hb)

    out = out[:B]
    return out[:, :A], out[:, A:]


# ----------------------------------------------------------------------------
# Pure-JAX reference (mirrors the PyTorch forward exactly) for validation.
# ----------------------------------------------------------------------------
def reference_forward(market, portfolio, params):
    x = jnp.transpose(market, (0, 2, 1))                  # (B, F, W)  NCL

    def conv1d(x, w, b):
        L = x.shape[-1]
        xp = jnp.pad(x, ((0, 0), (0, 0), (1, 1)))
        out = jnp.broadcast_to(b[None, :, None], (x.shape[0], w.shape[0], L))
        for k in range(3):
            out = out + jnp.einsum("oc,bcl->bol", w[:, :, k], xp[:, :, k:k + L])
        return out

    def pool(x):
        B, C, L = x.shape
        return x.reshape(B, C, L // 2, 2).max(axis=-1)

    x = jax.nn.relu(conv1d(x, params["conv1_w"], params["conv1_b"]))
    x = pool(x)
    x = jax.nn.relu(conv1d(x, params["conv2_w"], params["conv2_b"]))
    x = pool(x)
    x = jax.nn.relu(conv1d(x, params["conv3_w"], params["conv3_b"]))
    x = x.reshape(x.shape[0], -1)                         # channel-major flatten
    p = jax.nn.relu(portfolio @ params["pfc_w"].T + params["pfc_b"])
    comb = jnp.concatenate([x, p], axis=1)
    h = jax.nn.relu(comb @ params["fc1_w"].T + params["fc1_b"])
    h = jax.nn.relu(h @ params["fc2_w"].T + params["fc2_b"])
    mean = h @ params["mean_w"].T + params["mean_b"]
    log_std = jnp.clip(h @ params["ls_w"].T + params["ls_b"],
                       LOG_STD_MIN, LOG_STD_MAX)
    return mean, log_std


# ----------------------------------------------------------------------------
def init_params(key, window_size, feature_dim, hidden_dim, action_dim):
    hid4 = hidden_dim // 4
    conv_out = 128 * (window_size // 4)
    ks = jax.random.split(key, 16)
    n = lambda k, shp, s=0.1: (s * jax.random.normal(k, shp)).astype(jnp.float32)
    return {
        "conv1_w": n(ks[0], (32, feature_dim, 3)),
        "conv1_b": n(ks[1], (32,), 0.01),
        "conv2_w": n(ks[2], (64, 32, 3)),
        "conv2_b": n(ks[3], (64,), 0.01),
        "conv3_w": n(ks[4], (128, 64, 3)),
        "conv3_b": n(ks[5], (128,), 0.01),
        "pfc_w": n(ks[6], (hid4, 2)),
        "pfc_b": n(ks[7], (hid4,), 0.01),
        "fc1_w": n(ks[8], (hidden_dim, conv_out + hid4)),
        "fc1_b": n(ks[9], (hidden_dim,), 0.01),
        "fc2_w": n(ks[10], (hidden_dim, hidden_dim)),
        "fc2_b": n(ks[11], (hidden_dim,), 0.01),
        "mean_w": n(ks[12], (action_dim, hidden_dim)),
        "mean_b": n(ks[13], (action_dim,), 0.01),
        "ls_w": n(ks[14], (action_dim, hidden_dim)),
        "ls_b": n(ks[15], (action_dim,), 0.01),
    }


if __name__ == "__main__":
    B, W, F = 2, 16, 4          # batch, window_size, feature_dim
    HIDDEN, A = 32, 1

    key = jax.random.PRNGKey(0)
    kp, km, kq = jax.random.split(key, 3)
    params = init_params(kp, W, F, HIDDEN, A)
    market = jax.random.normal(km, (B, W, F), dtype=jnp.float32)
    portfolio = jax.random.normal(kq, (B, 2), dtype=jnp.float32)

    mean, log_std = cnn_actor_forward(market, portfolio, params, tile_b=8)
    jax.block_until_ready((mean, log_std))

    ref_mean, ref_ls = reference_forward(market, portfolio, params)
    assert mean.shape == (B, A) and log_std.shape == (B, A)
    # bf16 MXU operands with f32 accumulation -> ~1e-2-level agreement.
    assert np.allclose(np.asarray(mean), np.asarray(ref_mean), rtol=2e-2, atol=2e-2)
    assert np.allclose(np.asarray(log_std), np.asarray(ref_ls), rtol=2e-2, atol=2e-2)

    print("KERNEL_OK")
</pallas_src>

<mosaic_0001>
module attributes {stable_mosaic.version = 11 : i64} {
  func.func @_actor_kernel(%arg0: i32, %arg1: memref<128x4xf32, #tpu.memory_space<vmem>>, %arg2: memref<8x2xf32, #tpu.memory_space<vmem>>, %arg3: memref<128x6xf32, #tpu.memory_space<vmem>>, %arg4: memref<3x4x32xf32, #tpu.memory_space<vmem>>, %arg5: memref<1x32xf32, #tpu.memory_space<vmem>>, %arg6: memref<3x32x64xf32, #tpu.memory_space<vmem>>, %arg7: memref<1x64xf32, #tpu.memory_space<vmem>>, %arg8: memref<3x64x128xf32, #tpu.memory_space<vmem>>, %arg9: memref<1x128xf32, #tpu.memory_space<vmem>>, %arg10: memref<512x32xbf16, #tpu.memory_space<vmem>>, %arg11: memref<8x32xbf16, #tpu.memory_space<vmem>>, %arg12: memref<2x8xf32, #tpu.memory_space<vmem>>, %arg13: memref<1x8xf32, #tpu.memory_space<vmem>>, %arg14: memref<1x32xf32, #tpu.memory_space<vmem>>, %arg15: memref<32x32xbf16, #tpu.memory_space<vmem>>, %arg16: memref<1x32xf32, #tpu.memory_space<vmem>>, %arg17: memref<32x2xbf16, #tpu.memory_space<vmem>>, %arg18: memref<1x2xf32, #tpu.memory_space<vmem>>, %arg19: memref<8x2xf32, #tpu.memory_space<vmem>>, %arg20: memref<128x32xf32, #tpu.memory_space<vmem>>, %arg21: memref<64x64xf32, #tpu.memory_space<vmem>>, %arg22: memref<32x128xf32, #tpu.memory_space<vmem>>, %arg23: memref<8x512xf32, #tpu.memory_space<vmem>>) attributes {dimension_semantics = [#tpu.dimension_semantics<parallel>], iteration_bounds = array<i64: 1>, scalar_prefetch = 0 : i64, scratch_operands = 4 : i64, tpu.core_type = #tpu.core_type<tc>, window_params = [{transform_indices = @transform_0, window_bounds = array<i64: 128, 4>}, {transform_indices = @transform_1, window_bounds = array<i64: 8, 2>}, {pipeline_mode = #tpu.pipeline_mode<synchronous>, transform_indices = @transform_2, window_bounds = array<i64: 128, 6>}, {pipeline_mode = #tpu.pipeline_mode<synchronous>, transform_indices = @transform_3, window_bounds = array<i64: 3, 4, 32>}, {pipeline_mode = #tpu.pipeline_mode<synchronous>, transform_indices = @transform_4, window_bounds = array<i64: 1, 32>}, {pipeline_mode = #tpu.pipeline_mode<synchronous>, transform_indices = @transform_5, window_bounds = array<i64: 3, 32, 64>}, {pipeline_mode = #tpu.pipeline_mode<synchronous>, transform_indices = @transform_6, window_bounds = array<i64: 1, 64>}, {pipeline_mode = #tpu.pipeline_mode<synchronous>, transform_indices = @transform_7, window_bounds = array<i64: 3, 64, 128>}, {pipeline_mode = #tpu.pipeline_mode<synchronous>, transform_indices = @transform_8, window_bounds = array<i64: 1, 128>}, {pipeline_mode = #tpu.pipeline_mode<synchronous>, transform_indices = @transform_9, window_bounds = array<i64: 512, 32>}, {pipeline_mode = #tpu.pipeline_mode<synchronous>, transform_indices = @transform_10, window_bounds = array<i64: 8, 32>}, {pipeline_mode = #tpu.pipeline_mode<synchronous>, transform_indices = @transform_11, window_bounds = array<i64: 2, 8>}, {pipeline_mode = #tpu.pipeline_mode<synchronous>, transform_indices = @transform_12, window_bounds = array<i64: 1, 8>}, {pipeline_mode = #tpu.pipeline_mode<synchronous>, transform_indices = @transform_13, window_bounds = array<i64: 1, 32>}, {pipeline_mode = #tpu.pipeline_mode<synchronous>, transform_indices = @transform_14, window_bounds = array<i64: 32, 32>}, {pipeline_mode = #tpu.pipeline_mode<synchronous>, transform_indices = @transform_15, window_bounds = array<i64: 1, 32>}, {pipeline_mode = #tpu.pipeline_mode<synchronous>, transform_indices = @transform_16, window_bounds = array<i64: 32, 2>}, {pipeline_mode = #tpu.pipeline_mode<synchronous>, transform_indices = @transform_17, window_bounds = array<i64: 1, 2>}, {transform_indices = @transform_18, window_bounds = array<i64: 8, 2>}]} {
    %c0 = arith.constant 0 : index
    %c0_0 = arith.constant 0 : index
    %0 = vector.load %arg1[%c0, %c0_0] : memref<128x4xf32, #tpu.memory_space<vmem>>, vector<128x4xf32>
    %c0_1 = arith.constant 0 : index
    %c0_2 = arith.constant 0 : index
    %1 = vector.load %arg3[%c0_1, %c0_2] : memref<128x6xf32, #tpu.memory_space<vmem>>, vector<128x1xf32>
    %c0_3 = arith.constant 0 : index
    %c1 = arith.constant 1 : index
    %2 = vector.load %arg3[%c0_3, %c1] : memref<128x6xf32, #tpu.memory_space<vmem>>, vector<128x1xf32>
    %c0_4 = arith.constant 0 : index
    %c0_5 = arith.constant 0 : index
    %c0_6 = arith.constant 0 : index
    %3 = vector.load %arg4[%c0_4, %c0_5, %c0_6] : memref<3x4x32xf32, #tpu.memory_space<vmem>>, vector<1x4x32xf32>
    %4 = vector.shape_cast %3 : vector<1x4x32xf32> to vector<4x32xf32>
    %cst = arith.constant dense<0.000000e+00> : vector<128x32xf32>
    %5 = tpu.matmul %0, %4, %cst {dimension_numbers = #tpu.dot_dimension_numbers<[1], [0], [0], [1], [0, 0, 1, 1], [], []>} : vector<128x4xf32>, vector<4x32xf32>, vector<128x32xf32> -> vector<128x32xf32>
    %c1_7 = arith.constant 1 : index
    %c0_8 = arith.constant 0 : index
    %c0_9 = arith.constant 0 : index
    %6 = vector.load %arg4[%c1_7, %c0_8, %c0_9] : memref<3x4x32xf32, #tpu.memory_space<vmem>>, vector<1x4x32xf32>
    %7 = vector.shape_cast %6 : vector<1x4x32xf32> to vector<4x32xf32>
    %cst_10 = arith.constant dense<0.000000e+00> : vector<128x32xf32>
    %8 = tpu.matmul %0, %7, %cst_10 {dimension_numbers = #tpu.dot_dimension_numbers<[1], [0], [0], [1], [0, 0, 1, 1], [], []>} : vector<128x4xf32>, vector<4x32xf32>, vector<128x32xf32> -> vector<128x32xf32>
    %c2 = arith.constant 2 : index
    %c0_11 = arith.constant 0 : index
    %c0_12 = arith.constant 0 : index
    %9 = vector.load %arg4[%c2, %c0_11, %c0_12] : memref<3x4x32xf32, #tpu.memory_space<vmem>>, vector<1x4x32xf32>
    %10 = vector.shape_cast %9 : vector<1x4x32xf32> to vector<4x32xf32>
    %cst_13 = arith.constant dense<0.000000e+00> : vector<128x32xf32>
    %11 = tpu.matmul %0, %10, %cst_13 {dimension_numbers = #tpu.dot_dimension_numbers<[1], [0], [0], [1], [0, 0, 1, 1], [], []>} : vector<128x4xf32>, vector<4x32xf32>, vector<128x32xf32> -> vector<128x32xf32>
    %c1_i32 = arith.constant 1 : i32
    %12 = tpu.dynamic_rotate %5 by %c1_i32 dim 0 : vector<128x32xf32>, i32 -> vector<128x32xf32>
    %13 = vector.broadcast %1 : vector<128x1xf32> to vector<128x32xf32>
    %14 = arith.mulf %13, %12 : vector<128x32xf32>
    %15 = arith.addf %8, %14 : vector<128x32xf32>
    %c127_i32 = arith.constant 127 : i32
    %16 = tpu.dynamic_rotate %11 by %c127_i32 dim 0 : vector<128x32xf32>, i32 -> vector<128x32xf32>
    %17 = vector.broadcast %2 : vector<128x1xf32> to vector<128x32xf32>
    %18 = arith.mulf %17, %16 : vector<128x32xf32>
    %19 = arith.addf %15, %18 : vector<128x32xf32>
    %c0_14 = arith.constant 0 : index
    %c0_15 = arith.constant 0 : index
    %20 = vector.load %arg5[%c0_14, %c0_15] : memref<1x32xf32, #tpu.memory_space<vmem>>, vector<1x32xf32>
    %21 = vector.broadcast %20 : vector<1x32xf32> to vector<128x32xf32>
    %22 = arith.addf %19, %21 : vector<128x32xf32>
    %cst_16 = arith.constant 0.000000e+00 : f32
    %23 = vector.broadcast %cst_16 : f32 to vector<128x32xf32>
    %24 = arith.maximumf %22, %23 : vector<128x32xf32>
    %c0_17 = arith.constant 0 : index
    %c0_18 = arith.constant 0 : index
    %25 = vector.load %arg20[%c0_17, %c0_18] : memref<128x32xf32, #tpu.memory_space<vmem>>, vector<128x32xf32>
    tpu.vector_store %arg20[%c0_17, %c0_18], %24 {strides = array<i32>} : memref<128x32xf32, #tpu.memory_space<vmem>>, vector<128x32xf32>,
    %c0_19 = arith.constant 0 : index
    %c0_20 = arith.constant 0 : index
    %26 = tpu.strided_load %arg20[%c0_19, %c0_20] {strides = array<i32: 2, 1>} : memref<128x32xf32, #tpu.memory_space<vmem>>, vector<64x32xf32>
    %c1_21 = arith.constant 1 : index
    %c0_22 = arith.constant 0 : index
    %27 = tpu.strided_load %arg20[%c1_21, %c0_22] {strides = array<i32: 2, 1>} : memref<128x32xf32, #tpu.memory_space<vmem>>, vector<64x32xf32>
    %28 = arith.maximumf %26, %27 : vector<64x32xf32>
    %c0_23 = arith.constant 0 : index
    %c2_24 = arith.constant 2 : index
    %29 = vector.load %arg3[%c0_23, %c2_24] : memref<128x6xf32, #tpu.memory_space<vmem>>, vector<64x1xf32>
    %c0_25 = arith.constant 0 : index
    %c3 = arith.constant 3 : index
    %30 = vector.load %arg3[%c0_25, %c3] : memref<128x6xf32, #tpu.memory_space<vmem>>, vector<64x1xf32>
    %c0_26 = arith.constant 0 : index
    %c0_27 = arith.constant 0 : index
    %c0_28 = arith.constant 0 : index
    %31 = vector.load %arg6[%c0_26, %c0_27, %c0_28] : memref<3x32x64xf32, #tpu.memory_space<vmem>>, vector<1x32x64xf32>
    %32 = vector.shape_cast %31 : vector<1x32x64xf32> to vector<32x64xf32>
    %cst_29 = arith.constant dense<0.000000e+00> : vector<64x64xf32>
    %33 = tpu.matmul %28, %32, %cst_29 {dimension_numbers = #tpu.dot_dimension_numbers<[1], [0], [0], [1], [0, 0, 1, 1], [], []>} : vector<64x32xf32>, vector<32x64xf32>, vector<64x64xf32> -> vector<64x64xf32>
    %c1_30 = arith.constant 1 : index
    %c0_31 = arith.constant 0 : index
    %c0_32 = arith.constant 0 : index
    %34 = vector.load %arg6[%c1_30, %c0_31, %c0_32] : memref<3x32x64xf32, #tpu.memory_space<vmem>>, vector<1x32x64xf32>
    %35 = vector.shape_cast %34 : vector<1x32x64xf32> to vector<32x64xf32>
    %cst_33 = arith.constant dense<0.000000e+00> : vector<64x64xf32>
    %36 = tpu.matmul %28, %35, %cst_33 {dimension_numbers = #tpu.dot_dimension_numbers<[1], [0], [0], [1], [0, 0, 1, 1], [], []>} : vector<64x32xf32>, vector<32x64xf32>, vector<64x64xf32> -> vector<64x64xf32>
    %c2_34 = arith.constant 2 : index
    %c0_35 = arith.constant 0 : index
    %c0_36 = arith.constant 0 : index
    %37 = vector.load %arg6[%c2_34, %c0_35, %c0_36] : memref<3x32x64xf32, #tpu.memory_space<vmem>>, vector<1x32x64xf32>
    %38 = vector.shape_cast %37 : vector<1x32x64xf32> to vector<32x64xf32>
    %cst_37 = arith.constant dense<0.000000e+00> : vector<64x64xf32>
    %39 = tpu.matmul %28, %38, %cst_37 {dimension_numbers = #tpu.dot_dimension_numbers<[1], [0], [0], [1], [0, 0, 1, 1], [], []>} : vector<64x32xf32>, vector<32x64xf32>, vector<64x64xf32> -> vector<64x64xf32>
    %c1_i32_38 = arith.constant 1 : i32
    %40 = tpu.dynamic_rotate %33 by %c1_i32_38 dim 0 : vector<64x64xf32>, i32 -> vector<64x64xf32>
    %41 = vector.broadcast %29 : vector<64x1xf32> to vector<64x64xf32>
    %42 = arith.mulf %41, %40 : vector<64x64xf32>
    %43 = arith.addf %36, %42 : vector<64x64xf32>
    %c63_i32 = arith.constant 63 : i32
    %44 = tpu.dynamic_rotate %39 by %c63_i32 dim 0 : vector<64x64xf32>, i32 -> vector<64x64xf32>
    %45 = vector.broadcast %30 : vector<64x1xf32> to vector<64x64xf32>
    %46 = arith.mulf %45, %44 : vector<64x64xf32>
    %47 = arith.addf %43, %46 : vector<64x64xf32>
    %c0_39 = arith.constant 0 : index
    %c0_40 = arith.constant 0 : index
    %48 = vector.load %arg7[%c0_39, %c0_40] : memref<1x64xf32, #tpu.memory_space<vmem>>, vector<1x64xf32>
    %49 = vector.broadcast %48 : vector<1x64xf32> to vector<64x64xf32>
    %50 = arith.addf %47, %49 : vector<64x64xf32>
    %cst_41 = arith.constant 0.000000e+00 : f32
    %51 = vector.broadcast %cst_41 : f32 to vector<64x64xf32>
    %52 = arith.maximumf %50, %51 : vector<64x64xf32>
    %c0_42 = arith.constant 0 : index
    %c0_43 = arith.constant 0 : index
    %53 = vector.load %arg21[%c0_42, %c0_43] : memref<64x64xf32, #tpu.memory_space<vmem>>, vector<64x64xf32>
    tpu.vector_store %arg21[%c0_42, %c0_43], %52 {strides = array<i32>} : memref<64x64xf32, #tpu.memory_space<vmem>>, vector<64x64xf32>,
    %c0_44 = arith.constant 0 : index
    %c0_45 = arith.constant 0 : index
    %54 = tpu.strided_load %arg21[%c0_44, %c0_45] {strides = array<i32: 2, 1>} : memref<64x64xf32, #tpu.memory_space<vmem>>, vector<32x64xf32>
    %c1_46 = arith.constant 1 : index
    %c0_47 = arith.constant 0 : index
    %55 = tpu.strided_load %arg21[%c1_46, %c0_47] {strides = array<i32: 2, 1>} : memref<64x64xf32, #tpu.memory_space<vmem>>, vector<32x64xf32>
    %56 = arith.maximumf %54, %55 : vector<32x64xf32>
    %c0_48 = arith.constant 0 : index
    %c4 = arith.constant 4 : index
    %57 = vector.load %arg3[%c0_48, %c4] : memref<128x6xf32, #tpu.memory_space<vmem>>, vector<32x1xf32>
    %c0_49 = arith.constant 0 : index
    %c5 = arith.constant 5 : index
    %58 = vector.load %arg3[%c0_49, %c5] : memref<128x6xf32, #tpu.memory_space<vmem>>, vector<32x1xf32>
    %c0_50 = arith.constant 0 : index
    %c0_51 = arith.constant 0 : index
    %c0_52 = arith.constant 0 : index
    %59 = vector.load %arg8[%c0_50, %c0_51, %c0_52] : memref<3x64x128xf32, #tpu.memory_space<vmem>>, vector<1x64x128xf32>
    %60 = vector.shape_cast %59 : vector<1x64x128xf32> to vector<64x128xf32>
    %cst_53 = arith.constant dense<0.000000e+00> : vector<32x128xf32>
    %61 = tpu.matmul %56, %60, %cst_53 {dimension_numbers = #tpu.dot_dimension_numbers<[1], [0], [0], [1], [0, 0, 1, 1], [], []>} : vector<32x64xf32>, vector<64x128xf32>, vector<32x128xf32> -> vector<32x128xf32>
    %c1_54 = arith.constant 1 : index
    %c0_55 = arith.constant 0 : index
    %c0_56 = arith.constant 0 : index
    %62 = vector.load %arg8[%c1_54, %c0_55, %c0_56] : memref<3x64x128xf32, #tpu.memory_space<vmem>>, vector<1x64x128xf32>
    %63 = vector.shape_cast %62 : vector<1x64x128xf32> to vector<64x128xf32>
    %cst_57 = arith.constant dense<0.000000e+00> : vector<32x128xf32>
    %64 = tpu.matmul %56, %63, %cst_57 {dimension_numbers = #tpu.dot_dimension_numbers<[1], [0], [0], [1], [0, 0, 1, 1], [], []>} : vector<32x64xf32>, vector<64x128xf32>, vector<32x128xf32> -> vector<32x128xf32>
    %c2_58 = arith.constant 2 : index
    %c0_59 = arith.constant 0 : index
    %c0_60 = arith.constant 0 : index
    %65 = vector.load %arg8[%c2_58, %c0_59, %c0_60] : memref<3x64x128xf32, #tpu.memory_space<vmem>>, vector<1x64x128xf32>
    %66 = vector.shape_cast %65 : vector<1x64x128xf32> to vector<64x128xf32>
    %cst_61 = arith.constant dense<0.000000e+00> : vector<32x128xf32>
    %67 = tpu.matmul %56, %66, %cst_61 {dimension_numbers = #tpu.dot_dimension_numbers<[1], [0], [0], [1], [0, 0, 1, 1], [], []>} : vector<32x64xf32>, vector<64x128xf32>, vector<32x128xf32> -> vector<32x128xf32>
    %c1_i32_62 = arith.constant 1 : i32
    %68 = tpu.dynamic_rotate %61 by %c1_i32_62 dim 0 : vector<32x128xf32>, i32 -> vector<32x128xf32>
    %69 = vector.broadcast %57 : vector<32x1xf32> to vector<32x128xf32>
    %70 = arith.mulf %69, %68 : vector<32x128xf32>
    %71 = arith.addf %64, %70 : vector<32x128xf32>
    %c31_i32 = arith.constant 31 : i32
    %72 = tpu.dynamic_rotate %67 by %c31_i32 dim 0 : vector<32x128xf32>, i32 -> vector<32x128xf32>
    %73 = vector.broadcast %58 : vector<32x1xf32> to vector<32x128xf32>
    %74 = arith.mulf %73, %72 : vector<32x128xf32>
    %75 = arith.addf %71, %74 : vector<32x128xf32>
    %c0_63 = arith.constant 0 : index
    %c0_64 = arith.constant 0 : index
    %76 = vector.load %arg9[%c0_63, %c0_64] : memref<1x128xf32, #tpu.memory_space<vmem>>, vector<1x128xf32>
    %77 = vector.broadcast %76 : vector<1x128xf32> to vector<32x128xf32>
    %78 = arith.addf %75, %77 : vector<32x128xf32>
    %cst_65 = arith.constant 0.000000e+00 : f32
    %79 = vector.broadcast %cst_65 : f32 to vector<32x128xf32>
    %80 = arith.maximumf %78, %79 : vector<32x128xf32>
    %c0_66 = arith.constant 0 : index
    %c0_67 = arith.constant 0 : index
    %81 = vector.load %arg22[%c0_66, %c0_67] : memref<32x128xf32, #tpu.memory_space<vmem>>, vector<32x128xf32>
    tpu.vector_store %arg22[%c0_66, %c0_67], %80 {strides = array<i32>} : memref<32x128xf32, #tpu.memory_space<vmem>>, vector<32x128xf32>,
    %c0_68 = arith.constant 0 : index
    %c0_69 = arith.constant 0 : index
    %82 = tpu.strided_load %arg22[%c0_68, %c0_69] {strides = array<i32: 4, 1>} : memref<32x128xf32, #tpu.memory_space<vmem>>, vector<8x128xf32>
    %c0_70 = arith.constant 0 : index
    %c0_71 = arith.constant 0 : index
    %83 = vector.load %arg23[%c0_70, %c0_71] : memref<8x512xf32, #tpu.memory_space<vmem>>, vector<8x128xf32>
    tpu.vector_store %arg23[%c0_70, %c0_71], %82 {strides = array<i32>} : memref<8x512xf32, #tpu.memory_space<vmem>>, vector<8x128xf32>,
    %c1_72 = arith.constant 1 : index
    %c0_73 = arith.constant 0 : index
    %84 = tpu.strided_load %arg22[%c1_72, %c0_73] {strides = array<i32: 4, 1>} : memref<32x128xf32, #tpu.memory_space<vmem>>, vector<8x128xf32>
    %c0_74 = arith.constant 0 : index
    %c128 = arith.constant 128 : index
    %85 = vector.load %arg23[%c0_74, %c128] : memref<8x512xf32, #tpu.memory_space<vmem>>, vector<8x128xf32>
    tpu.vector_store %arg23[%c0_74, %c128], %84 {strides = array<i32>} : memref<8x512xf32, #tpu.memory_space<vmem>>, vector<8x128xf32>,
    %c2_75 = arith.constant 2 : index
    %c0_76 = arith.constant 0 : index
    %86 = tpu.strided_load %arg22[%c2_75, %c0_76] {strides = array<i32: 4, 1>} : memref<32x128xf32, #tpu.memory_space<vmem>>, vector<8x128xf32>
    %c0_77 = arith.constant 0 : index
    %c256 = arith.constant 256 : index
    %87 = vector.load %arg23[%c0_77, %c256] : memref<8x512xf32, #tpu.memory_space<vmem>>, vector<8x128xf32>
    tpu.vector_store %arg23[%c0_77, %c256], %86 {strides = array<i32>} : memref<8x512xf32, #tpu.memory_space<vmem>>, vector<8x128xf32>,
    %c3_78 = arith.constant 3 : index
    %c0_79 = arith.constant 0 : index
    %88 = tpu.strided_load %arg22[%c3_78, %c0_79] {strides = array<i32: 4, 1>} : memref<32x128xf32, #tpu.memory_space<vmem>>, vector<8x128xf32>
    %c0_80 = arith.constant 0 : index
    %c384 = arith.constant 384 : index
    %89 = vector.load %arg23[%c0_80, %c384] : memref<8x512xf32, #tpu.memory_space<vmem>>, vector<8x128xf32>
    tpu.vector_store %arg23[%c0_80, %c384], %88 {strides = array<i32>} : memref<8x512xf32, #tpu.memory_space<vmem>>, vector<8x128xf32>,
    %c0_81 = arith.constant 0 : index
    %c0_82 = arith.constant 0 : index
    %90 = vector.load %arg2[%c0_81, %c0_82] : memref<8x2xf32, #tpu.memory_space<vmem>>, vector<8x2xf32>
    %c0_83 = arith.constant 0 : index
    %c0_84 = arith.constant 0 : index
    %91 = vector.load %arg12[%c0_83, %c0_84] : memref<2x8xf32, #tpu.memory_space<vmem>>, vector<2x8xf32>
    %cst_85 = arith.constant dense<0.000000e+00> : vector<8x8xf32>
    %92 = tpu.matmul %90, %91, %cst_85 {dimension_numbers = #tpu.dot_dimension_numbers<[1], [0], [0], [1], [0, 0, 1, 1], [], []>} : vector<8x2xf32>, vector<2x8xf32>, vector<8x8xf32> -> vector<8x8xf32>
    %c0_86 = arith.constant 0 : index
    %c0_87 = arith.constant 0 : index
    %93 = vector.load %arg13[%c0_86, %c0_87] : memref<1x8xf32, #tpu.memory_space<vmem>>, vector<1x8xf32>
    %94 = vector.broadcast %93 : vector<1x8xf32> to vector<8x8xf32>
    %95 = arith.addf %92, %94 : vector<8x8xf32>
    %cst_88 = arith.constant 0.000000e+00 : f32
    %96 = vector.broadcast %cst_88 : f32 to vector<8x8xf32>
    %97 = arith.maximumf %95, %96 : vector<8x8xf32>
    %c0_89 = arith.constant 0 : index
    %c0_90 = arith.constant 0 : index
    %98 = vector.load %arg23[%c0_89, %c0_90] : memref<8x512xf32, #tpu.memory_space<vmem>>, vector<8x512xf32>
    %99 = arith.truncf %98 : vector<8x512xf32> to vector<8x512xbf16>
    %c0_91 = arith.constant 0 : index
    %c0_92 = arith.constant 0 : index
    %100 = vector.load %arg10[%c0_91, %c0_92] : memref<512x32xbf16, #tpu.memory_space<vmem>>, vector<512x32xbf16>
    %cst_93 = arith.constant dense<0.000000e+00> : vector<8x32xf32>
    %101 = tpu.matmul %99, %100, %cst_93 {dimension_numbers = #tpu.dot_dimension_numbers<[1], [0], [0], [1], [0, 0, 1, 1], [], []>} : vector<8x512xbf16>, vector<512x32xbf16>, vector<8x32xf32> -> vector<8x32xf32>
    %102 = arith.truncf %97 : vector<8x8xf32> to vector<8x8xbf16>
    %c0_94 = arith.constant 0 : index
    %c0_95 = arith.constant 0 : index
    %103 = vector.load %arg11[%c0_94, %c0_95] : memref<8x32xbf16, #tpu.memory_space<vmem>>, vector<8x32xbf16>
    %cst_96 = arith.constant dense<0.000000e+00> : vector<8x32xf32>
    %104 = tpu.matmul %102, %103, %cst_96 {dimension_numbers = #tpu.dot_dimension_numbers<[1], [0], [0], [1], [0, 0, 1, 1], [], []>} : vector<8x8xbf16>, vector<8x32xbf16>, vector<8x32xf32> -> vector<8x32xf32>
    %105 = arith.addf %101, %104 : vector<8x32xf32>
    %c0_97 = arith.constant 0 : index
    %c0_98 = arith.constant 0 : index
    %106 = vector.load %arg14[%c0_97, %c0_98] : memref<1x32xf32, #tpu.memory_space<vmem>>, vector<1x32xf32>
    %107 = vector.broadcast %106 : vector<1x32xf32> to vector<8x32xf32>
    %108 = arith.addf %105, %107 : vector<8x32xf32>
    %cst_99 = arith.constant 0.000000e+00 : f32
    %109 = vector.broadcast %cst_99 : f32 to vector<8x32xf32>
    %110 = arith.maximumf %108, %109 : vector<8x32xf32>
    %111 = arith.truncf %110 : vector<8x32xf32> to vector<8x32xbf16>
    %c0_100 = arith.constant 0 : index
    %c0_101 = arith.constant 0 : index
    %112 = vector.load %arg15[%c0_100, %c0_101] : memref<32x32xbf16, #tpu.memory_space<vmem>>, vector<32x32xbf16>
    %cst_102 = arith.constant dense<0.000000e+00> : vector<8x32xf32>
    %113 = tpu.matmul %111, %112, %cst_102 {dimension_numbers = #tpu.dot_dimension_numbers<[1], [0], [0], [1], [0, 0, 1, 1], [], []>} : vector<8x32xbf16>, vector<32x32xbf16>, vector<8x32xf32> -> vector<8x32xf32>
    %c0_103 = arith.constant 0 : index
    %c0_104 = arith.constant 0 : index
    %114 = vector.load %arg16[%c0_103, %c0_104] : memref<1x32xf32, #tpu.memory_space<vmem>>, vector<1x32xf32>
    %115 = vector.broadcast %114 : vector<1x32xf32> to vector<8x32xf32>
    %116 = arith.addf %113, %115 : vector<8x32xf32>
    %cst_105 = arith.constant 0.000000e+00 : f32
    %117 = vector.broadcast %cst_105 : f32 to vector<8x32xf32>
    %118 = arith.maximumf %116, %117 : vector<8x32xf32>
    %119 = arith.truncf %118 : vector<8x32xf32> to vector<8x32xbf16>
    %c0_106 = arith.constant 0 : index
    %c0_107 = arith.constant 0 : index
    %120 = vector.load %arg17[%c0_106, %c0_107] : memref<32x2xbf16, #tpu.memory_space<vmem>>, vector<32x2xbf16>
    %cst_108 = arith.constant dense<0.000000e+00> : vector<8x2xf32>
    %121 = tpu.matmul %119, %120, %cst_108 {dimension_numbers = #tpu.dot_dimension_numbers<[1], [0], [0], [1], [0, 0, 1, 1], [], []>} : vector<8x32xbf16>, vector<32x2xbf16>, vector<8x2xf32> -> vector<8x2xf32>
    %c0_109 = arith.constant 0 : index
    %c0_110 = arith.constant 0 : index
    %122 = vector.load %arg18[%c0_109, %c0_110] : memref<1x2xf32, #tpu.memory_space<vmem>>, vector<1x2xf32>
    %123 = vector.broadcast %122 : vector<1x2xf32> to vector<8x2xf32>
    %124 = arith.addf %121, %123 : vector<8x2xf32>
    %125 = vector.extract_strided_slice %124 {offsets = [0, 0], sizes = [8, 1], strides = [1, 1]} : vector<8x2xf32> to vector<8x1xf32>
    %c0_111 = arith.constant 0 : index
    %c0_112 = arith.constant 0 : index
    %126 = vector.load %arg19[%c0_111, %c0_112] : memref<8x2xf32, #tpu.memory_space<vmem>>, vector<8x1xf32>
    tpu.vector_store %arg19[%c0_111, %c0_112], %125 {strides = array<i32>} : memref<8x2xf32, #tpu.memory_space<vmem>>, vector<8x1xf32>,
    %127 = vector.extract_strided_slice %124 {offsets = [0, 1], sizes = [8, 1], strides = [1, 1]} : vector<8x2xf32> to vector<8x1xf32>
    %cst_113 = arith.constant -2.000000e+01 : f32
    %cst_114 = arith.constant 2.000000e+00 : f32
    %128 = vector.broadcast %cst_113 : f32 to vector<8x1xf32>
    %129 = arith.maximumf %128, %127 : vector<8x1xf32>
    %130 = vector.broadcast %cst_114 : f32 to vector<8x1xf32>
    %131 = arith.minimumf %130, %129 : vector<8x1xf32>
    %c0_115 = arith.constant 0 : index
    %c1_116 = arith.constant 1 : index
    %132 = vector.load %arg19[%c0_115, %c1_116] : memref<8x2xf32, #tpu.memory_space<vmem>>, vector<8x1xf32>
    tpu.vector_store %arg19[%c0_115, %c1_116], %131 {strides = array<i32>} : memref<8x2xf32, #tpu.memory_space<vmem>>, vector<8x1xf32>,
    return
  }
  func.func @transform_0(%arg0: i32) -> (i32, i32) {
    %c0_i32 = arith.constant 0 : i32
    %c0_i32_0 = arith.constant 0 : i32
    return %arg0, %c0_i32 : i32, i32
  }
  func.func @transform_1(%arg0: i32) -> (i32, i32) {
    %c0_i32 = arith.constant 0 : i32
    %c0_i32_0 = arith.constant 0 : i32
    return %arg0, %c0_i32 : i32, i32
  }
  func.func @transform_2(%arg0: i32) -> (i32, i32) {
    %c0_i32 = arith.constant 0 : i32
    %c0_i32_0 = arith.constant 0 : i32
    %c0_i32_1 = arith.constant 0 : i32
    return %c0_i32, %c0_i32_0 : i32, i32
  }
  func.func @transform_3(%arg0: i32) -> (i32, i32, i32) {
    %c0_i32 = arith.constant 0 : i32
    %c0_i32_0 = arith.constant 0 : i32
    %c0_i32_1 = arith.constant 0 : i32
    %c0_i32_2 = arith.constant 0 : i32
    return %c0_i32, %c0_i32_0, %c0_i32_1 : i32, i32, i32
  }
  func.func @transform_4(%arg0: i32) -> (i32, i32) {
    %c0_i32 = arith.constant 0 : i32
    %c0_i32_0 = arith.constant 0 : i32
    %c0_i32_1 = arith.constant 0 : i32
    return %c0_i32, %c0_i32_0 : i32, i32
  }
  func.func @transform_5(%arg0: i32) -> (i32, i32, i32) {
    %c0_i32 = arith.constant 0 : i32
    %c0_i32_0 = arith.constant 0 : i32
    %c0_i32_1 = arith.constant 0 : i32
    %c0_i32_2 = arith.constant 0 : i32
    return %c0_i32, %c0_i32_0, %c0_i32_1 : i32, i32, i32
  }
  func.func @transform_6(%arg0: i32) -> (i32, i32) {
    %c0_i32 = arith.constant 0 : i32
    %c0_i32_0 = arith.constant 0 : i32
    %c0_i32_1 = arith.constant 0 : i32
    return %c0_i32, %c0_i32_0 : i32, i32
  }
  func.func @transform_7(%arg0: i32) -> (i32, i32, i32) {
    %c0_i32 = arith.constant 0 : i32
    %c0_i32_0 = arith.constant 0 : i32
    %c0_i32_1 = arith.constant 0 : i32
    %c0_i32_2 = arith.constant 0 : i32
    return %c0_i32, %c0_i32_0, %c0_i32_1 : i32, i32, i32
  }
  func.func @transform_8(%arg0: i32) -> (i32, i32) {
    %c0_i32 = arith.constant 0 : i32
    %c0_i32_0 = arith.constant 0 : i32
    %c0_i32_1 = arith.constant 0 : i32
    return %c0_i32, %c0_i32_0 : i32, i32
  }
  func.func @transform_9(%arg0: i32) -> (i32, i32) {
    %c0_i32 = arith.constant 0 : i32
    %c0_i32_0 = arith.constant 0 : i32
    %c0_i32_1 = arith.constant 0 : i32
    return %c0_i32, %c0_i32_0 : i32, i32
  }
  func.func @transform_10(%arg0: i32) -> (i32, i32) {
    %c0_i32 = arith.constant 0 : i32
    %c0_i32_0 = arith.constant 0 : i32
    %c0_i32_1 = arith.constant 0 : i32
    return %c0_i32, %c0_i32_0 : i32, i32
  }
  func.func @transform_11(%arg0: i32) -> (i32, i32) {
    %c0_i32 = arith.constant 0 : i32
    %c0_i32_0 = arith.constant 0 : i32
    %c0_i32_1 = arith.constant 0 : i32
    return %c0_i32, %c0_i32_0 : i32, i32
  }
  func.func @transform_12(%arg0: i32) -> (i32, i32) {
    %c0_i32 = arith.constant 0 : i32
    %c0_i32_0 = arith.constant 0 : i32
    %c0_i32_1 = arith.constant 0 : i32
    return %c0_i32, %c0_i32_0 : i32, i32
  }
  func.func @transform_13(%arg0: i32) -> (i32, i32) {
    %c0_i32 = arith.constant 0 : i32
    %c0_i32_0 = arith.constant 0 : i32
    %c0_i32_1 = arith.constant 0 : i32
    return %c0_i32, %c0_i32_0 : i32, i32
  }
  func.func @transform_14(%arg0: i32) -> (i32, i32) {
    %c0_i32 = arith.constant 0 : i32
    %c0_i32_0 = arith.constant 0 : i32
    %c0_i32_1 = arith.constant 0 : i32
    return %c0_i32, %c0_i32_0 : i32, i32
  }
  func.func @transform_15(%arg0: i32) -> (i32, i32) {
    %c0_i32 = arith.constant 0 : i32
    %c0_i32_0 = arith.constant 0 : i32
    %c0_i32_1 = arith.constant 0 : i32
    return %c0_i32, %c0_i32_0 : i32, i32
  }
  func.func @transform_16(%arg0: i32) -> (i32, i32) {
    %c0_i32 = arith.constant 0 : i32
    %c0_i32_0 = arith.constant 0 : i32
    %c0_i32_1 = arith.constant 0 : i32
    return %c0_i32, %c0_i32_0 : i32, i32
  }
  func.func @transform_17(%arg0: i32) -> (i32, i32) {
    %c0_i32 = arith.constant 0 : i32
    %c0_i32_0 = arith.constant 0 : i32
    %c0_i32_1 = arith.constant 0 : i32
    return %c0_i32, %c0_i32_0 : i32, i32
  }
  func.func @transform_18(%arg0: i32) -> (i32, i32) {
    %c0_i32 = arith.constant 0 : i32
    %c0_i32_0 = arith.constant 0 : i32
    return %arg0, %c0_i32 : i32, i32
  }
}

</mosaic_0001>

<llo_original>
// kernel: tpu_custom_call.1
$region0: #{tpu_custom_call.1}
  #allocation0 [shape = 'u32[]', space=smem, size = 0x4, offset = 0x4, fixed_abs, tag = 'smem constant byte address 0x4 - core index']
  #allocation1 [shape = 'u32[144,128]{1,0:T(1,128)}', space=vmem, size = 0x12000, scoped, tag = 'internal scratch']
  #allocation2 [shape = 'f32[128,32]{1,0:T(8,128)}', space=vmem, size = 0x10000, scoped, tag = 'scratch operand']
  #allocation3 [shape = 'f32[64,64]{1,0:T(8,128)}', space=vmem, size = 0x8000, scoped, tag = 'scratch operand']
  #allocation4 [shape = 'f32[32,128]{1,0:T(8,128)}', space=vmem, size = 0x4000, scoped, tag = 'scratch operand']
  #allocation5 [shape = 'f32[8,512]{1,0:T(8,128)}', space=vmem, size = 0x4000, scoped, tag = 'scratch operand']
  %s0 = inlined_call_operand.vmem [shape: f32[128,4], index: 0, kind: input, shape index: {}]
  %s1 = inlined_call_operand.vmem [shape: f32[8,2], index: 1, kind: input, shape index: {}]
  %s2 = inlined_call_operand.vmem [shape: f32[128,6], index: 2, kind: input, shape index: {}]
  %s3 = inlined_call_operand.vmem [shape: f32[3,4,32], index: 3, kind: input, shape index: {}]
  %s4 = inlined_call_operand.vmem [shape: f32[1,32], index: 4, kind: input, shape index: {}]
  %s5 = inlined_call_operand.vmem [shape: f32[3,32,64], index: 5, kind: input, shape index: {}]
  %s6 = inlined_call_operand.vmem [shape: f32[1,64], index: 6, kind: input, shape index: {}]
  %s7 = inlined_call_operand.vmem [shape: f32[3,64,128], index: 7, kind: input, shape index: {}]
  %s8 = inlined_call_operand.vmem [shape: f32[1,128], index: 8, kind: input, shape index: {}]
  %s9 = inlined_call_operand.vmem [shape: bf16[512,32], index: 9, kind: input, shape index: {}]
  %s10 = inlined_call_operand.vmem [shape: bf16[8,32], index: 10, kind: input, shape index: {}]
  %s11 = inlined_call_operand.vmem [shape: f32[2,8], index: 11, kind: input, shape index: {}]
  %s12 = inlined_call_operand.vmem [shape: f32[1,8], index: 12, kind: input, shape index: {}]
  %s13 = inlined_call_operand.vmem [shape: f32[1,32], index: 13, kind: input, shape index: {}]
  %s14 = inlined_call_operand.vmem [shape: bf16[32,32], index: 14, kind: input, shape index: {}]
  %s15 = inlined_call_operand.vmem [shape: f32[1,32], index: 15, kind: input, shape index: {}]
  %s16 = inlined_call_operand.vmem [shape: bf16[32,2], index: 16, kind: input, shape index: {}]
  %s17 = inlined_call_operand.vmem [shape: f32[1,2], index: 17, kind: input, shape index: {}]
  %s18 = inlined_call_operand.vmem [shape: f32[8,2], index: 18, kind: output, shape index: {}]
  %s19 = sld [smem:[#allocation0]]
  $region82: #{tpu_custom_call.1} parent=0
    _
  %s21 = ssub.s32 1, %s19
  %s22 = scalar_select 0, %s21, %s19
  // Predicated region
  $region2: #{tpu_custom_call.1} parent=0 // pred_check
    _
  $region3: #{tpu_custom_call.1} parent=0 // pred_check_branch
    %24 = sbr.rel (0) target = $region5
  $region4: #{tpu_custom_call.1} parent=0 // pred_region
    _
  $region5: #{tpu_custom_call.1} parent=0 // pred_fallthru
    _
  // Predicated region
  $region6: #{tpu_custom_call.1} parent=0 // pred_check
    _
  $region7: #{tpu_custom_call.1} parent=0 // pred_check_branch
    %26 = sbr.rel (0) target = $region9
  $region8: #{tpu_custom_call.1} parent=0 // pred_region
    _
  $region9: #{tpu_custom_call.1} parent=0 // pred_fallthru
    _
  // Predicated region
  $region10: #{tpu_custom_call.1} parent=0 // pred_check
    _
  $region11: #{tpu_custom_call.1} parent=0 // pred_check_branch
    %28 = sbr.rel (0) target = $region13
  $region12: #{tpu_custom_call.1} parent=0 // pred_region
    _
  $region13: #{tpu_custom_call.1} parent=0 // pred_fallthru
    _
  // Predicated region
  $region14: #{tpu_custom_call.1} parent=0 // pred_check
    _
  $region15: #{tpu_custom_call.1} parent=0 // pred_check_branch
    %30 = sbr.rel (0) target = $region17
  $region16: #{tpu_custom_call.1} parent=0 // pred_region
    _
  $region17: #{tpu_custom_call.1} parent=0 // pred_fallthru
    _
  // Predicated region
  $region18: #{tpu_custom_call.1} parent=0 // pred_check
    _
  $region19: #{tpu_custom_call.1} parent=0 // pred_check_branch
    %32 = sbr.rel (0) target = $region21
  $region20: #{tpu_custom_call.1} parent=0 // pred_region
    _
  $region21: #{tpu_custom_call.1} parent=0 // pred_fallthru
    _
  // Predicated region
  $region22: #{tpu_custom_call.1} parent=0 // pred_check
    _
  $region23: #{tpu_custom_call.1} parent=0 // pred_check_branch
    %34 = sbr.rel (0) target = $region25
  $region24: #{tpu_custom_call.1} parent=0 // pred_region
    _
  $region25: #{tpu_custom_call.1} parent=0 // pred_fallthru
    _
  // Predicated region
  $region26: #{tpu_custom_call.1} parent=0 // pred_check
    _
  $region27: #{tpu_custom_call.1} parent=0 // pred_check_branch
    %36 = sbr.rel (0) target = $region29
  $region28: #{tpu_custom_call.1} parent=0 // pred_region
    _
  $region29: #{tpu_custom_call.1} parent=0 // pred_fallthru
    _
  // Predicated region
  $region30: #{tpu_custom_call.1} parent=0 // pred_check
    _
  $region31: #{tpu_custom_call.1} parent=0 // pred_check_branch
    %38 = sbr.rel (0) target = $region33
  $region32: #{tpu_custom_call.1} parent=0 // pred_region
    _
  $region33: #{tpu_custom_call.1} parent=0 // pred_fallthru
    _
  // Predicated region
  $region34: #{tpu_custom_call.1} parent=0 // pred_check
    _
  $region35: #{tpu_custom_call.1} parent=0 // pred_check_branch
    %40 = sbr.rel (0) target = $region37
  $region36: #{tpu_custom_call.1} parent=0 // pred_region
    _
  $region37: #{tpu_custom_call.1} parent=0 // pred_fallthru
    _
  // Predicated region
  $region38: #{tpu_custom_call.1} parent=0 // pred_check
    _
  $region39: #{tpu_custom_call.1} parent=0 // pred_check_branch
    %42 = sbr.rel (0) target = $region41
  $region40: #{tpu_custom_call.1} parent=0 // pred_region
    _
  $region41: #{tpu_custom_call.1} parent=0 // pred_fallthru
    _
  // Predicated region
  $region42: #{tpu_custom_call.1} parent=0 // pred_check
    _
  $region43: #{tpu_custom_call.1} parent=0 // pred_check_branch
    %44 = sbr.rel (0) target = $region45
  $region44: #{tpu_custom_call.1} parent=0 // pred_region
    _
  $region45: #{tpu_custom_call.1} parent=0 // pred_fallthru
    _
  // Predicated region
  $region46: #{tpu_custom_call.1} parent=0 // pred_check
    _
  $region47: #{tpu_custom_call.1} parent=0 // pred_check_branch
    %46 = sbr.rel (0) target = $region49
  $region48: #{tpu_custom_call.1} parent=0 // pred_region
    _
  $region49: #{tpu_custom_call.1} parent=0 // pred_fallthru
    _
  // Predicated region
  $region50: #{tpu_custom_call.1} parent=0 // pred_check
    _
  $region51: #{tpu_custom_call.1} parent=0 // pred_check_branch
    %48 = sbr.rel (0) target = $region53
  $region52: #{tpu_custom_call.1} parent=0 // pred_region
    _
  $region53: #{tpu_custom_call.1} parent=0 // pred_fallthru
    _
  // Predicated region
  $region54: #{tpu_custom_call.1} parent=0 // pred_check
    _
  $region55: #{tpu_custom_call.1} parent=0 // pred_check_branch
    %50 = sbr.rel (0) target = $region57
  $region56: #{tpu_custom_call.1} parent=0 // pred_region
    _
  $region57: #{tpu_custom_call.1} parent=0 // pred_fallthru
    _
  // Predicated region
  $region58: #{tpu_custom_call.1} parent=0 // pred_check
    _
  $region59: #{tpu_custom_call.1} parent=0 // pred_check_branch
    %52 = sbr.rel (0) target = $region61
  $region60: #{tpu_custom_call.1} parent=0 // pred_region
    _
  $region61: #{tpu_custom_call.1} parent=0 // pred_fallthru
    _
  // Predicated region
  $region62: #{tpu_custom_call.1} parent=0 // pred_check
    _
  $region63: #{tpu_custom_call.1} parent=0 // pred_check_branch
    %54 = sbr.rel (0) target = $region65
  $region64: #{tpu_custom_call.1} parent=0 // pred_region
    _
  $region65: #{tpu_custom_call.1} parent=0 // pred_fallthru
    _
  // Predicated region
  $region66: #{tpu_custom_call.1} parent=0 // pred_check
    _
  $region67: #{tpu_custom_call.1} parent=0 // pred_check_branch
    %56 = sbr.rel (0) target = $region69
  $region68: #{tpu_custom_call.1} parent=0 // pred_region
    _
  $region69: #{tpu_custom_call.1} parent=0 // pred_fallthru
    _
  // Predicated region
  $region70: #{tpu_custom_call.1} parent=0 // pred_check
    _
  $region71: #{tpu_custom_call.1} parent=0 // pred_check_branch
    %58 = sbr.rel (0) target = $region73
  $region72: #{tpu_custom_call.1} parent=0 // pred_region
    _
  $region73: #{tpu_custom_call.1} parent=0 // pred_fallthru
    _
  %v60 = vld [vmem:[%s0] sm:$0xff]
  %v61 = vld [vmem:[%s0 + $0x8] sm:$0xff]
  %v62 = vld [vmem:[%s0 + $0x10] sm:$0xff]
  %v63 = vld [vmem:[%s0 + $0x18] sm:$0xff]
  %v64 = vld [vmem:[%s0 + $0x20] sm:$0xff]
  %v65 = vld [vmem:[%s0 + $0x28] sm:$0xff]
  %v66 = vld [vmem:[%s0 + $0x30] sm:$0xff]
  %v67 = vld [vmem:[%s0 + $0x38] sm:$0xff]
  %v68 = vld [vmem:[%s0 + $0x40] sm:$0xff]
  %v69 = vld [vmem:[%s0 + $0x48] sm:$0xff]
  %v70 = vld [vmem:[%s0 + $0x50] sm:$0xff]
  %v71 = vld [vmem:[%s0 + $0x58] sm:$0xff]
  %v72 = vld [vmem:[%s0 + $0x60] sm:$0xff]
  %v73 = vld [vmem:[%s0 + $0x68] sm:$0xff]
  %v74 = vld [vmem:[%s0 + $0x70] sm:$0xff]
  %v75 = vld [vmem:[%s0 + $0x78] sm:$0xff]
  %v76 = vld [vmem:[%s2] sm:$0xff]
  %v77 = vld [vmem:[%s2 + $0x8] sm:$0xff]
  %v78 = vld [vmem:[%s2 + $0x10] sm:$0xff]
  %v79 = vld [vmem:[%s2 + $0x18] sm:$0xff]
  %v80 = vld [vmem:[%s2 + $0x20] sm:$0xff]
  %v81 = vld [vmem:[%s2 + $0x28] sm:$0xff]
  %v82 = vld [vmem:[%s2 + $0x30] sm:$0xff]
  %v83 = vld [vmem:[%s2 + $0x38] sm:$0xff]
  %v84 = vld [vmem:[%s2 + $0x40] sm:$0xff]
  %v85 = vld [vmem:[%s2 + $0x48] sm:$0xff]
  %v86 = vld [vmem:[%s2 + $0x50] sm:$0xff]
  %v87 = vld [vmem:[%s2 + $0x58] sm:$0xff]
  %v88 = vld [vmem:[%s2 + $0x60] sm:$0xff]
  %v89 = vld [vmem:[%s2 + $0x68] sm:$0xff]
  %v90 = vld [vmem:[%s2 + $0x70] sm:$0xff]
  %v91 = vld [vmem:[%s2 + $0x78] sm:$0xff]
  %v92 = vld [vmem:[%s3] sm:$0xf]
  %vm93 = vcmask 31744
  %v95 = vsel %vm93, %v60, 0
  %v98 = vsel %vm93, %v61, 0
  %v101 = vsel %vm93, %v62, 0
  %v104 = vsel %vm93, %v63, 0
  %v107 = vsel %vm93, %v64, 0
  %v110 = vsel %vm93, %v65, 0
  %v113 = vsel %vm93, %v66, 0
  %v116 = vsel %vm93, %v67, 0
  %v119 = vsel %vm93, %v68, 0
  %v122 = vsel %vm93, %v69, 0
  %v125 = vsel %vm93, %v70, 0
  %v128 = vsel %vm93, %v71, 0
  %v131 = vsel %vm93, %v72, 0
  %v134 = vsel %vm93, %v73, 0
  %v137 = vsel %vm93, %v74, 0
  %v140 = vsel %vm93, %v75, 0
  %vm142 = vcmask 1043456
  %v144 = vsel %vm142, %v92, 0
  %146 = vmatprep.subr.mxu0 0.0
  %147 = vmatpush1.msra.mxu0 %v144
  %148 = vmatprep.subr.mxu0 0.0
  %149 = vmatpush1.msra.mxu0 0.0
  %150 = vmatprep.subr.mxu0 0.0
  %151 = vmatpush1.msra.mxu0 0.0
  %152 = vmatprep.subr.mxu0 0.0
  %153 = vmatpush1.msra.mxu0 0.0
  %154 = vmatprep.subr.mxu0 0.0
  %155 = vmatpush1.msra.mxu0 0.0
  %156 = vmatprep.subr.mxu0 0.0
  %157 = vmatpush1.msra.mxu0 0.0
  %158 = vmatprep.subr.mxu0 0.0
  %159 = vmatpush1.msra.mxu0 0.0
  %160 = vmatprep.subr.mxu0 0.0
  %161 = vmatpush1.msra.mxu0 0.0
  %162 = vmatprep.subr.mxu0 0.0
  %163 = vmatpush1.msra.mxu0 0.0
  %164 = vmatprep.subr.mxu0 0.0
  %165 = vmatpush1.msra.mxu0 0.0
  %166 = vmatprep.subr.mxu0 0.0
  %167 = vmatpush1.msra.mxu0 0.0
  %168 = vmatprep.subr.mxu0 0.0
  %169 = vmatpush1.msra.mxu0 0.0
  %170 = vmatprep.subr.mxu0 0.0
  %171 = vmatpush1.msra.mxu0 0.0
  %172 = vmatprep.subr.mxu0 0.0
  %173 = vmatpush1.msra.mxu0 0.0
  %174 = vmatprep.subr.mxu0 0.0
  %175 = vmatpush1.msra.mxu0 0.0
  %176 = vmatprep.subr.mxu0 0.0
  %177 = vmatpush1.msra.mxu0 0.0
  %178 = vmatprep.subr.mxu0 0.0
  %179 = vmatpush1.msra.mxu0 0.0
  %180 = vmatprep.subr.mxu0 0.0
  %181 = vmatpush1.msra.mxu0 0.0
  %182 = vmatprep.subr.mxu0 0.0
  %183 = vmatpush1.msra.mxu0 0.0
  %184 = vmatprep.subr.mxu0 0.0
  %185 = vmatpush1.msra.mxu0 0.0
  %186 = vmatprep.subr.mxu0 0.0
  %187 = vmatpush1.msra.mxu0 0.0
  %188 = vmatprep.subr.mxu0 0.0
  %189 = vmatpush1.msra.mxu0 0.0
  %190 = vmatprep.subr.mxu0 0.0
  %191 = vmatpush1.msra.mxu0 0.0
  %192 = vmatprep.subr.mxu0 0.0
  %193 = vmatpush1.msra.mxu0 0.0
  %194 = vmatprep.subr.mxu0 0.0
  %195 = vmatpush1.msra.mxu0 0.0
  %196 = vmatprep.subr.mxu0 0.0
  %197 = vmatpush1.msra.mxu0 0.0
  %198 = vmatprep.subr.mxu0 0.0
  %199 = vmatpush1.msra.mxu0 0.0
  %200 = vmatprep.subr.mxu0 0.0
  %201 = vmatpush1.msra.mxu0 0.0
  %202 = vmatprep.subr.mxu0 0.0
  %203 = vmatpush1.msra.mxu0 0.0
  %204 = vmatprep.subr.mxu0 0.0
  %205 = vmatpush1.msra.mxu0 0.0
  %206 = vmatprep.subr.mxu0 0.0
  %207 = vmatpush1.msra.mxu0 0.0
  %208 = vmatprep.subr.mxu0 0.0
  %209 = vmatpush1.msra.mxu0 0.0
  %210 = vmatprep.mubr.f32.mxu0 0.0
  %211 = vmatmul.mubr.f32.gmra.mrb[0].mxu0 %v95
  %v212 = vpop.f32.mrb[0].mxu0
  %v213 = vadd.f32 0.0, %v212
  %v214 = vpop.f32.mrb[0].mxu0
  %215 = vmatprep.mubr.f32.mxu0 0.0
  %216 = vmatmul.mubr.f32.gmra.mrb[0].mxu0 %v98
  %v217 = vpop.f32.mrb[0].mxu0
  %v218 = vadd.f32 0.0, %v217
  %v219 = vpop.f32.mrb[0].mxu0
  %220 = vmatprep.mubr.f32.mxu0 0.0
  %221 = vmatmul.mubr.f32.gmra.mrb[0].mxu0 %v101
  %v222 = vpop.f32.mrb[0].mxu0
  %v223 = vadd.f32 0.0, %v222
  %v224 = vpop.f32.mrb[0].mxu0
  %225 = vmatprep.mubr.f32.mxu0 0.0
  %226 = vmatmul.mubr.f32.gmra.mrb[0].mxu0 %v104
  %v227 = vpop.f32.mrb[0].mxu0
  %v228 = vadd.f32 0.0, %v227
  %v229 = vpop.f32.mrb[0].mxu0
  %230 = vmatprep.mubr.f32.mxu0 0.0
  %231 = vmatmul.mubr.f32.gmra.mrb[0].mxu0 %v107
  %v232 = vpop.f32.mrb[0].mxu0
  %v233 = vadd.f32 0.0, %v232
  %v234 = vpop.f32.mrb[0].mxu0
  %235 = vmatprep.mubr.f32.mxu0 0.0
  %236 = vmatmul.mubr.f32.gmra.mrb[0].mxu0 %v110
  %v237 = vpop.f32.mrb[0].mxu0
  %v238 = vadd.f32 0.0, %v237
  %v239 = vpop.f32.mrb[0].mxu0
  %240 = vmatprep.mubr.f32.mxu0 0.0
  %241 = vmatmul.mubr.f32.gmra.mrb[0].mxu0 %v113
  %v242 = vpop.f32.mrb[0].mxu0
  %v243 = vadd.f32 0.0, %v242
  %v244 = vpop.f32.mrb[0].mxu0
  %245 = vmatprep.mubr.f32.mxu0 0.0
  %246 = vmatmul.mubr.f32.gmra.mrb[0].mxu0 %v116
  %v247 = vpop.f32.mrb[0].mxu0
  %v248 = vadd.f32 0.0, %v247
  %v249 = vpop.f32.mrb[0].mxu0
  %250 = vmatprep.mubr.f32.mxu0 0.0
  %251 = vmatmul.mubr.f32.gmra.mrb[0].mxu0 %v119
  %v252 = vpop.f32.mrb[0].mxu0
  %v253 = vadd.f32 0.0, %v252
  %v254 = vpop.f32.mrb[0].mxu0
  %255 = vmatprep.mubr.f32.mxu0 0.0
  %256 = vmatmul.mubr.f32.gmra.mrb[0].mxu0 %v122
  %v257 = vpop.f32.mrb[0].mxu0
  %v258 = vadd.f32 0.0, %v257
  %v259 = vpop.f32.mrb[0].mxu0
  %260 = vmatprep.mubr.f32.mxu0 0.0
  %261 = vmatmul.mubr.f32.gmra.mrb[0].mxu0 %v125
  %v262 = vpop.f32.mrb[0].mxu0
  %v263 = vadd.f32 0.0, %v262
  %v264 = vpop.f32.mrb[0].mxu0
  %265 = vmatprep.mubr.f32.mxu0 0.0
  %266 = vmatmul.mubr.f32.gmra.mrb[0].mxu0 %v128
  %v267 = vpop.f32.mrb[0].mxu0
  %v268 = vadd.f32 0.0, %v267
  %v269 = vpop.f32.mrb[0].mxu0
  %270 = vmatprep.mubr.f32.mxu0 0.0
  %271 = vmatmul.mubr.f32.gmra.mrb[0].mxu0 %v131
  %v272 = vpop.f32.mrb[0].mxu0
  %v273 = vadd.f32 0.0, %v272
  %v274 = vpop.f32.mrb[0].mxu0
  %275 = vmatprep.mubr.f32.mxu0 0.0
  %276 = vmatmul.mubr.f32.gmra.mrb[0].mxu0 %v134
  %v277 = vpop.f32.mrb[0].mxu0
  %v278 = vadd.f32 0.0, %v277
  %v279 = vpop.f32.mrb[0].mxu0
  %280 = vmatprep.mubr.f32.mxu0 0.0
  %281 = vmatmul.mubr.f32.gmra.mrb[0].mxu0 %v137
  %v282 = vpop.f32.mrb[0].mxu0
  %v283 = vadd.f32 0.0, %v282
  %v284 = vpop.f32.mrb[0].mxu0
  %285 = vmatprep.mubr.f32.mxu0 0.0
  %286 = vmatmul.mubr.f32.gmra.mrb[0].mxu0 %v140
  %v287 = vpop.f32.mrb[0].mxu0
  %v288 = vadd.f32 0.0, %v287
  %v289 = vpop.f32.mrb[0].mxu0
  %290 = vdwg.mxu0
  %s291 = scalar_lea.vmem %s3, 4
  %v292 = vld [vmem:[%s291] sm:$0xf]
  %s293 = scalar_lea.vmem %s3, 8
  %v294 = vld [vmem:[%s293] sm:$0xf]
  %v296 = vsel %vm142, %v294, 0
  %298 = vmatprep.subr.mxu0 0.0
  %299 = vmatpush1.msra.mxu0 %v296
  %300 = vmatprep.subr.mxu0 0.0
  %301 = vmatpush1.msra.mxu0 0.0
  %302 = vmatprep.subr.mxu0 0.0
  %303 = vmatpush1.msra.mxu0 0.0
  %304 = vmatprep.subr.mxu0 0.0
  %305 = vmatpush1.msra.mxu0 0.0
  %306 = vmatprep.subr.mxu0 0.0
  %307 = vmatpush1.msra.mxu0 0.0
  %308 = vmatprep.subr.mxu0 0.0
  %309 = vmatpush1.msra.mxu0 0.0
  %310 = vmatprep.subr.mxu0 0.0
  %311 = vmatpush1.msra.mxu0 0.0
  %312 = vmatprep.subr.mxu0 0.0
  %313 = vmatpush1.msra.mxu0 0.0
  %314 = vmatprep.subr.mxu0 0.0
  %315 = vmatpush1.msra.mxu0 0.0
  %316 = vmatprep.subr.mxu0 0.0
  %317 = vmatpush1.msra.mxu0 0.0
  %318 = vmatprep.subr.mxu0 0.0
  %319 = vmatpush1.msra.mxu0 0.0
  %320 = vmatprep.subr.mxu0 0.0
  %321 = vmatpush1.msra.mxu0 0.0
  %322 = vmatprep.subr.mxu0 0.0
  %323 = vmatpush1.msra.mxu0 0.0
  %324 = vmatprep.subr.mxu0 0.0
  %325 = vmatpush1.msra.mxu0 0.0
  %326 = vmatprep.subr.mxu0 0.0
  %327 = vmatpush1.msra.mxu0 0.0
  %328 = vmatprep.subr.mxu0 0.0
  %329 = vmatpush1.msra.mxu0 0.0
  %330 = vmatprep.subr.mxu0 0.0
  %331 = vmatpush1.msra.mxu0 0.0
  %332 = vmatprep.subr.mxu0 0.0
  %333 = vmatpush1.msra.mxu0 0.0
  %334 = vmatprep.subr.mxu0 0.0
  %335 = vmatpush1.msra.mxu0 0.0
  %336 = vmatprep.subr.mxu0 0.0
  %337 = vmatpush1.msra.mxu0 0.0
  %338 = vmatprep.subr.mxu0 0.0
  %339 = vmatpush1.msra.mxu0 0.0
  %340 = vmatprep.subr.mxu0 0.0
  %341 = vmatpush1.msra.mxu0 0.0
  %342 = vmatprep.subr.mxu0 0.0
  %343 = vmatpush1.msra.mxu0 0.0
  %344 = vmatprep.subr.mxu0 0.0
  %345 = vmatpush1.msra.mxu0 0.0
  %346 = vmatprep.subr.mxu0 0.0
  %347 = vmatpush1.msra.mxu0 0.0
  %348 = vmatprep.subr.mxu0 0.0
  %349 = vmatpush1.msra.mxu0 0.0
  %350 = vmatprep.subr.mxu0 0.0
  %351 = vmatpush1.msra.mxu0 0.0
  %352 = vmatprep.subr.mxu0 0.0
  %353 = vmatpush1.msra.mxu0 0.0
  %354 = vmatprep.subr.mxu0 0.0
  %355 = vmatpush1.msra.mxu0 0.0
  %356 = vmatprep.subr.mxu0 0.0
  %357 = vmatpush1.msra.mxu0 0.0
  %358 = vmatprep.subr.mxu0 0.0
  %359 = vmatpush1.msra.mxu0 0.0
  %360 = vmatprep.subr.mxu0 0.0
  %361 = vmatpush1.msra.mxu0 0.0
  %362 = vmatprep.mubr.f32.mxu0 0.0
  %363 = vmatmul.mubr.f32.gmra.mrb[0].mxu0 %v95
  %v364 = vpop.f32.mrb[0].mxu0
  %v365 = vadd.f32 0.0, %v364
  %v366 = vpop.f32.mrb[0].mxu0
  %367 = vmatprep.mubr.f32.mxu0 0.0
  %368 = vmatmul.mubr.f32.gmra.mrb[0].mxu0 %v98
  %v369 = vpop.f32.mrb[0].mxu0
  %v370 = vadd.f32 0.0, %v369
  %v371 = vpop.f32.mrb[0].mxu0
  %372 = vmatprep.mubr.f32.mxu0 0.0
  %373 = vmatmul.mubr.f32.gmra.mrb[0].mxu0 %v101
  %v374 = vpop.f32.mrb[0].mxu0
  %v375 = vadd.f32 0.0, %v374
  %v376 = vpop.f32.mrb[0].mxu0
  %377 = vmatprep.mubr.f32.mxu0 0.0
  %378 = vmatmul.mubr.f32.gmra.mrb[0].mxu0 %v104
  %v379 = vpop.f32.mrb[0].mxu0
  %v380 = vadd.f32 0.0, %v379
  %v381 = vpop.f32.mrb[0].mxu0
  %382 = vmatprep.mubr.f32.mxu0 0.0
  %383 = vmatmul.mubr.f32.gmra.mrb[0].mxu0 %v107
  %v384 = vpop.f32.mrb[0].mxu0
  %v385 = vadd.f32 0.0, %v384
  %v386 = vpop.f32.mrb[0].mxu0
  %387 = vmatprep.mubr.f32.mxu0 0.0
  %388 = vmatmul.mubr.f32.gmra.mrb[0].mxu0 %v110
  %v389 = vpop.f32.mrb[0].mxu0
  %v390 = vadd.f32 0.0, %v389
  %v391 = vpop.f32.mrb[0].mxu0
  %392 = vmatprep.mubr.f32.mxu0 0.0
  %393 = vmatmul.mubr.f32.gmra.mrb[0].mxu0 %v113
  %v394 = vpop.f32.mrb[0].mxu0
  %v395 = vadd.f32 0.0, %v394
  %v396 = vpop.f32.mrb[0].mxu0
  %397 = vmatprep.mubr.f32.mxu0 0.0
  %398 = vmatmul.mubr.f32.gmra.mrb[0].mxu0 %v116
  %v399 = vpop.f32.mrb[0].mxu0
  %v400 = vadd.f32 0.0, %v399
  %v401 = vpop.f32.mrb[0].mxu0
  %402 = vmatprep.mubr.f32.mxu0 0.0
  %403 = vmatmul.mubr.f32.gmra.mrb[0].mxu0 %v119
  %v404 = vpop.f32.mrb[0].mxu0
  %v405 = vadd.f32 0.0, %v404
  %v406 = vpop.f32.mrb[0].mxu0
  %407 = vmatprep.mubr.f32.mxu0 0.0
  %408 = vmatmul.mubr.f32.gmra.mrb[0].mxu0 %v122
  %v409 = vpop.f32.mrb[0].mxu0
  %v410 = vadd.f32 0.0, %v409
  %v411 = vpop.f32.mrb[0].mxu0
  %412 = vmatprep.mubr.f32.mxu0 0.0
  %413 = vmatmul.mubr.f32.gmra.mrb[0].mxu0 %v125
  %v414 = vpop.f32.mrb[0].mxu0
  %v415 = vadd.f32 0.0, %v414
  %v416 = vpop.f32.mrb[0].mxu0
  %417 = vmatprep.mubr.f32.mxu0 0.0
  %418 = vmatmul.mubr.f32.gmra.mrb[0].mxu0 %v128
  %v419 = vpop.f32.mrb[0].mxu0
  %v420 = vadd.f32 0.0, %v419
  %v421 = vpop.f32.mrb[0].mxu0
  %422 = vmatprep.mubr.f32.mxu0 0.0
  %423 = vmatmul.mubr.f32.gmra.mrb[0].mxu0 %v131
  %v424 = vpop.f32.mrb[0].mxu0
  %v425 = vadd.f32 0.0, %v424
  %v426 = vpop.f32.mrb[0].mxu0
  %427 = vmatprep.mubr.f32.mxu0 0.0
  %428 = vmatmul.mubr.f32.gmra.mrb[0].mxu0 %v134
  %v429 = vpop.f32.mrb[0].mxu0
  %v430 = vadd.f32 0.0, %v429
  %v431 = vpop.f32.mrb[0].mxu0
  %432 = vmatprep.mubr.f32.mxu0 0.0
  %433 = vmatmul.mubr.f32.gmra.mrb[0].mxu0 %v137
  %v434 = vpop.f32.mrb[0].mxu0
  %v435 = vadd.f32 0.0, %v434
  %v436 = vpop.f32.mrb[0].mxu0
  %437 = vmatprep.mubr.f32.mxu0 0.0
  %438 = vmatmul.mubr.f32.gmra.mrb[0].mxu0 %v140
  %v439 = vpop.f32.mrb[0].mxu0
  %v440 = vadd.f32 0.0, %v439
  %v441 = vpop.f32.mrb[0].mxu0
  %442 = vdwg.mxu0
  %v443 = vrot.slane %v213, 7
  %v444 = vrot.slane %v218, 7
  %v445 = vrot.slane %v223, 7
  %v446 = vrot.slane %v228, 7
  %v447 = vrot.slane %v233, 7
  %v448 = vrot.slane %v238, 7
  %v449 = vrot.slane %v243, 7
  %v450 = vrot.slane %v248, 7
  %v451 = vrot.slane %v253, 7
  %v452 = vrot.slane %v258, 7
  %v453 = vrot.slane %v263, 7
  %v454 = vrot.slane %v268, 7
  %v455 = vrot.slane %v273, 7
  %v456 = vrot.slane %v278, 7
  %v457 = vrot.slane %v283, 7
  %v458 = vrot.slane %v288, 7
  %v459 = vlaneseq
  %v460 = vshrl.u32 %v459, 7
  %vm461 = vcmp.lt.s32.totalorder %v460, 1
  %v462 = vsel %vm461, %v457, %v458
  %v463 = vsel %vm461, %v456, %v457
  %v464 = vsel %vm461, %v455, %v456
  %v465 = vsel %vm461, %v454, %v455
  %v466 = vsel %vm461, %v453, %v454
  %v467 = vsel %vm461, %v452, %v453
  %v468 = vsel %vm461, %v451, %v452
  %v469 = vsel %vm461, %v450, %v451
  %v470 = vsel %vm461, %v449, %v450
  %v471 = vsel %vm461, %v448, %v449
  %v472 = vsel %vm461, %v447, %v448
  %v473 = vsel %vm461, %v446, %v447
  %v474 = vsel %vm461, %v445, %v446
  %v475 = vsel %vm461, %v444, %v445
  %v476 = vsel %vm461, %v443, %v444
  %v477 = vsel %vm461, %v458, %v443
  %479 = vset.pattern.permute.xlu0 0
  %480 = vperm.xlu0 %479, %v76
  %v481 = vpop.permute.xlu0 %480
  %484 = vset.pattern.permute.xlu0 0
  %485 = vperm.xlu0 %484, %v77
  %v486 = vpop.permute.xlu0 %485
  %489 = vset.pattern.permute.xlu0 0
  %490 = vperm.xlu0 %489, %v78
  %v491 = vpop.permute.xlu0 %490
  %494 = vset.pattern.permute.xlu0 0
  %495 = vperm.xlu0 %494, %v79
  %v496 = vpop.permute.xlu0 %495
  %499 = vset.pattern.permute.xlu0 0
  %500 = vperm.xlu0 %499, %v80
  %v501 = vpop.permute.xlu0 %500
  %504 = vset.pattern.permute.xlu0 0
  %505 = vperm.xlu0 %504, %v81
  %v506 = vpop.permute.xlu0 %505
  %509 = vset.pattern.permute.xlu0 0
  %510 = vperm.xlu0 %509, %v82
  %v511 = vpop.permute.xlu0 %510
  %514 = vset.pattern.permute.xlu0 0
  %515 = vperm.xlu0 %514, %v83
  %v516 = vpop.permute.xlu0 %515
  %519 = vset.pattern.permute.xlu0 0
  %520 = vperm.xlu0 %519, %v84
  %v521 = vpop.permute.xlu0 %520
  %524 = vset.pattern.permute.xlu0 0
  %525 = vperm.xlu0 %524, %v85
  %v526 = vpop.permute.xlu0 %525
  %529 = vset.pattern.permute.xlu0 0
  %530 = vperm.xlu0 %529, %v86
  %v531 = vpop.permute.xlu0 %530
  %534 = vset.pattern.permute.xlu0 0
  %535 = vperm.xlu0 %534, %v87
  %v536 = vpop.permute.xlu0 %535
  %539 = vset.pattern.permute.xlu0 0
  %540 = vperm.xlu0 %539, %v88
  %v541 = vpop.permute.xlu0 %540
  %544 = vset.pattern.permute.xlu0 0
  %545 = vperm.xlu0 %544, %v89
  %v546 = vpop.permute.xlu0 %545
  %549 = vset.pattern.permute.xlu0 0
  %550 = vperm.xlu0 %549, %v90
  %v551 = vpop.permute.xlu0 %550
  %554 = vset.pattern.permute.xlu0 0
  %555 = vperm.xlu0 %554, %v91
  %v556 = vpop.permute.xlu0 %555
  %v558 = vmul.f32 %v481, %v477
  %v559 = vmul.f32 %v486, %v476
  %v560 = vmul.f32 %v491, %v475
  %v561 = vmul.f32 %v496, %v474
  %v562 = vmul.f32 %v501, %v473
  %v563 = vmul.f32 %v506, %v472
  %v564 = vmul.f32 %v511, %v471
  %v565 = vmul.f32 %v516, %v470
  %v566 = vmul.f32 %v521, %v469
  %v567 = vmul.f32 %v526, %v468
  %v568 = vmul.f32 %v531, %v467
  %v569 = vmul.f32 %v536, %v466
  %v570 = vmul.f32 %v541, %v465
  %v571 = vmul.f32 %v546, %v464
  %v572 = vmul.f32 %v551, %v463
  %v573 = vmul.f32 %v556, %v462
  %v575 = vsel %vm142, %v292, 0
  %577 = vmatprep.subr.mxu0 0.0
  %578 = vmatpush1.msra.mxu0 %v575
  %579 = vmatprep.subr.mxu0 0.0
  %580 = vmatpush1.msra.mxu0 0.0
  %581 = vmatprep.subr.mxu0 0.0
  %582 = vmatpush1.msra.mxu0 0.0
  %583 = vmatprep.subr.mxu0 0.0
  %584 = vmatpush1.msra.mxu0 0.0
  %585 = vmatprep.subr.mxu0 0.0
  %586 = vmatpush1.msra.mxu0 0.0
  %587 = vmatprep.subr.mxu0 0.0
  %588 = vmatpush1.msra.mxu0 0.0
  %589 = vmatprep.subr.mxu0 0.0
  %590 = vmatpush1.msra.mxu0 0.0
  %591 = vmatprep.subr.mxu0 0.0
  %592 = vmatpush1.msra.mxu0 0.0
  %593 = vmatprep.subr.mxu0 0.0
  %594 = vmatpush1.msra.mxu0 0.0
  %595 = vmatprep.subr.mxu0 0.0
  %596 = vmatpush1.msra.mxu0 0.0
  %597 = vmatprep.subr.mxu0 0.0
  %598 = vmatpush1.msra.mxu0 0.0
  %599 = vmatprep.subr.mxu0 0.0
  %600 = vmatpush1.msra.mxu0 0.0
  %601 = vmatprep.subr.mxu0 0.0
  %602 = vmatpush1.msra.mxu0 0.0
  %603 = vmatprep.subr.mxu0 0.0
  %604 = vmatpush1.msra.mxu0 0.0
  %605 = vmatprep.subr.mxu0 0.0
  %606 = vmatpush1.msra.mxu0 0.0
  %607 = vmatprep.subr.mxu0 0.0
  %608 = vmatpush1.msra.mxu0 0.0
  %609 = vmatprep.subr.mxu0 0.0
  %610 = vmatpush1.msra.mxu0 0.0
  %611 = vmatprep.subr.mxu0 0.0
  %612 = vmatpush1.msra.mxu0 0.0
  %613 = vmatprep.subr.mxu0 0.0
  %614 = vmatpush1.msra.mxu0 0.0
  %615 = vmatprep.subr.mxu0 0.0
  %616 = vmatpush1.msra.mxu0 0.0
  %617 = vmatprep.subr.mxu0 0.0
  %618 = vmatpush1.msra.mxu0 0.0
  %619 = vmatprep.subr.mxu0 0.0
  %620 = vmatpush1.msra.mxu0 0.0
  %621 = vmatprep.subr.mxu0 0.0
  %622 = vmatpush1.msra.mxu0 0.0
  %623 = vmatprep.subr.mxu0 0.0
  %624 = vmatpush1.msra.mxu0 0.0
  %625 = vmatprep.subr.mxu0 0.0
  %626 = vmatpush1.msra.mxu0 0.0
  %627 = vmatprep.subr.mxu0 0.0
  %628 = vmatpush1.msra.mxu0 0.0
  %629 = vmatprep.subr.mxu0 0.0
  %630 = vmatpush1.msra.mxu0 0.0
  %631 = vmatprep.subr.mxu0 0.0
  %632 = vmatpush1.msra.mxu0 0.0
  %633 = vmatprep.subr.mxu0 0.0
  %634 = vmatpush1.msra.mxu0 0.0
  %635 = vmatprep.subr.mxu0 0.0
  %636 = vmatpush1.msra.mxu0 0.0
  %637 = vmatprep.subr.mxu0 0.0
  %638 = vmatpush1.msra.mxu0 0.0
  %639 = vmatprep.subr.mxu0 0.0
  %640 = vmatpush1.msra.mxu0 0.0
  %641 = vmatprep.mubr.f32.mxu0 0.0
  %642 = vmatmul.mubr.f32.gmra.mrb[0].mxu0 %v95
  %v643 = vpop.f32.mrb[0].mxu0
  %v644 = vadd.f32 %v558, %v643
  %v645 = vpop.f32.mrb[0].mxu0
  %646 = vmatprep.mubr.f32.mxu0 0.0
  %647 = vmatmul.mubr.f32.gmra.mrb[0].mxu0 %v98
  %v648 = vpop.f32.mrb[0].mxu0
  %v649 = vadd.f32 %v559, %v648
  %v650 = vpop.f32.mrb[0].mxu0
  %651 = vmatprep.mubr.f32.mxu0 0.0
  %652 = vmatmul.mubr.f32.gmra.mrb[0].mxu0 %v101
  %v653 = vpop.f32.mrb[0].mxu0
  %v654 = vadd.f32 %v560, %v653
  %v655 = vpop.f32.mrb[0].mxu0
  %656 = vmatprep.mubr.f32.mxu0 0.0
  %657 = vmatmul.mubr.f32.gmra.mrb[0].mxu0 %v104
  %v658 = vpop.f32.mrb[0].mxu0
  %v659 = vadd.f32 %v561, %v658
  %v660 = vpop.f32.mrb[0].mxu0
  %661 = vmatprep.mubr.f32.mxu0 0.0
  %662 = vmatmul.mubr.f32.gmra.mrb[0].mxu0 %v107
  %v663 = vpop.f32.mrb[0].mxu0
  %v664 = vadd.f32 %v562, %v663
  %v665 = vpop.f32.mrb[0].mxu0
  %666 = vmatprep.mubr.f32.mxu0 0.0
  %667 = vmatmul.mubr.f32.gmra.mrb[0].mxu0 %v110
  %v668 = vpop.f32.mrb[0].mxu0
  %v669 = vadd.f32 %v563, %v668
  %v670 = vpop.f32.mrb[0].mxu0
  %671 = vmatprep.mubr.f32.mxu0 0.0
  %672 = vmatmul.mubr.f32.gmra.mrb[0].mxu0 %v113
  %v673 = vpop.f32.mrb[0].mxu0
  %v674 = vadd.f32 %v564, %v673
  %v675 = vpop.f32.mrb[0].mxu0
  %676 = vmatprep.mubr.f32.mxu0 0.0
  %677 = vmatmul.mubr.f32.gmra.mrb[0].mxu0 %v116
  %v678 = vpop.f32.mrb[0].mxu0
  %v679 = vadd.f32 %v565, %v678
  %v680 = vpop.f32.mrb[0].mxu0
  %681 = vmatprep.mubr.f32.mxu0 0.0
  %682 = vmatmul.mubr.f32.gmra.mrb[0].mxu0 %v119
  %v683 = vpop.f32.mrb[0].mxu0
  %v684 = vadd.f32 %v566, %v683
  %v685 = vpop.f32.mrb[0].mxu0
  %686 = vmatprep.mubr.f32.mxu0 0.0
  %687 = vmatmul.mubr.f32.gmra.mrb[0].mxu0 %v122
  %v688 = vpop.f32.mrb[0].mxu0
  %v689 = vadd.f32 %v567, %v688
  %v690 = vpop.f32.mrb[0].mxu0
  %691 = vmatprep.mubr.f32.mxu0 0.0
  %692 = vmatmul.mubr.f32.gmra.mrb[0].mxu0 %v125
  %v693 = vpop.f32.mrb[0].mxu0
  %v694 = vadd.f32 %v568, %v693
  %v695 = vpop.f32.mrb[0].mxu0
  %696 = vmatprep.mubr.f32.mxu0 0.0
  %697 = vmatmul.mubr.f32.gmra.mrb[0].mxu0 %v128
  %v698 = vpop.f32.mrb[0].mxu0
  %v699 = vadd.f32 %v569, %v698
  %v700 = vpop.f32.mrb[0].mxu0
  %701 = vmatprep.mubr.f32.mxu0 0.0
  %702 = vmatmul.mubr.f32.gmra.mrb[0].mxu0 %v131
  %v703 = vpop.f32.mrb[0].mxu0
  %v704 = vadd.f32 %v570, %v703
  %v705 = vpop.f32.mrb[0].mxu0
  %706 = vmatprep.mubr.f32.mxu0 0.0
  %707 = vmatmul.mubr.f32.gmra.mrb[0].mxu0 %v134
  %v708 = vpop.f32.mrb[0].mxu0
  %v709 = vadd.f32 %v571, %v708
  %v710 = vpop.f32.mrb[0].mxu0
  %711 = vmatprep.mubr.f32.mxu0 0.0
  %712 = vmatmul.mubr.f32.gmra.mrb[0].mxu0 %v137
  %v713 = vpop.f32.mrb[0].mxu0
  %v714 = vadd.f32 %v572, %v713
  %v715 = vpop.f32.mrb[0].mxu0
  %716 = vmatprep.mubr.f32.mxu0 0.0
  %717 = vmatmul.mubr.f32.gmra.mrb[0].mxu0 %v140
  %v718 = vpop.f32.mrb[0].mxu0
  %v719 = vadd.f32 %v573, %v718
  %v720 = vpop.f32.mrb[0].mxu0
  %721 = vdwg.mxu0
  %v722 = vrot.slane %v365, 1
  %v723 = vrot.slane %v370, 1
  %v724 = vrot.slane %v375, 1
  %v725 = vrot.slane %v380, 1
  %v726 = vrot.slane %v385, 1
  %v727 = vrot.slane %v390, 1
  %v728 = vrot.slane %v395, 1
  %v729 = vrot.slane %v400, 1
  %v730 = vrot.slane %v405, 1
  %v731 = vrot.slane %v410, 1
  %v732 = vrot.slane %v415, 1
  %v733 = vrot.slane %v420, 1
  %v734 = vrot.slane %v425, 1
  %v735 = vrot.slane %v430, 1
  %v736 = vrot.slane %v435, 1
  %v737 = vrot.slane %v440, 1
  %vm738 = vcmp.lt.s32.totalorder %v460, 7
  %v739 = vsel %vm738, %v736, %v737
  %v740 = vsel %vm738, %v735, %v736
  %v741 = vsel %vm738, %v734, %v735
  %v742 = vsel %vm738, %v733, %v734
  %v743 = vsel %vm738, %v732, %v733
  %v744 = vsel %vm738, %v731, %v732
  %v745 = vsel %vm738, %v730, %v731
  %v746 = vsel %vm738, %v729, %v730
  %v747 = vsel %vm738, %v728, %v729
  %v748 = vsel %vm738, %v727, %v728
  %v749 = vsel %vm738, %v726, %v727
  %v750 = vsel %vm738, %v725, %v726
  %v751 = vsel %vm738, %v724, %v725
  %v752 = vsel %vm738, %v723, %v724
  %v753 = vsel %vm738, %v722, %v723
  %v754 = vsel %vm738, %v737, %v722
  %755 = vset.pattern.permute.xlu0 1
  %756 = vperm.xlu0 %755, %v76
  %v757 = vpop.permute.xlu0 %756
  %759 = vset.pattern.permute.xlu0 1
  %760 = vperm.xlu0 %759, %v77
  %v761 = vpop.permute.xlu0 %760
  %763 = vset.pattern.permute.xlu0 1
  %764 = vperm.xlu0 %763, %v78
  %v765 = vpop.permute.xlu0 %764
  %767 = vset.pattern.permute.xlu0 1
  %768 = vperm.xlu0 %767, %v79
  %v769 = vpop.permute.xlu0 %768
  %771 = vset.pattern.permute.xlu0 1
  %772 = vperm.xlu0 %771, %v80
  %v773 = vpop.permute.xlu0 %772
  %775 = vset.pattern.permute.xlu0 1
  %776 = vperm.xlu0 %775, %v81
  %v777 = vpop.permute.xlu0 %776
  %779 = vset.pattern.permute.xlu0 1
  %780 = vperm.xlu0 %779, %v82
  %v781 = vpop.permute.xlu0 %780
  %783 = vset.pattern.permute.xlu0 1
  %784 = vperm.xlu0 %783, %v83
  %v785 = vpop.permute.xlu0 %784
  %787 = vset.pattern.permute.xlu0 1
  %788 = vperm.xlu0 %787, %v84
  %v789 = vpop.permute.xlu0 %788
  %791 = vset.pattern.permute.xlu0 1
  %792 = vperm.xlu0 %791, %v85
  %v793 = vpop.permute.xlu0 %792
  %795 = vset.pattern.permute.xlu0 1
  %796 = vperm.xlu0 %795, %v86
  %v797 = vpop.permute.xlu0 %796
  %799 = vset.pattern.permute.xlu0 1
  %800 = vperm.xlu0 %799, %v87
  %v801 = vpop.permute.xlu0 %800
  %803 = vset.pattern.permute.xlu0 1
  %804 = vperm.xlu0 %803, %v88
  %v805 = vpop.permute.xlu0 %804
  %807 = vset.pattern.permute.xlu0 1
  %808 = vperm.xlu0 %807, %v89
  %v809 = vpop.permute.xlu0 %808
  %811 = vset.pattern.permute.xlu0 1
  %812 = vperm.xlu0 %811, %v90
  %v813 = vpop.permute.xlu0 %812
  %815 = vset.pattern.permute.xlu0 1
  %816 = vperm.xlu0 %815, %v91
  %v817 = vpop.permute.xlu0 %816
  %v819 = vmul.f32 %v757, %v753
  %v820 = vmul.f32 %v761, %v752
  %v821 = vmul.f32 %v765, %v751
  %v822 = vmul.f32 %v769, %v750
  %v823 = vmul.f32 %v773, %v749
  %v824 = vmul.f32 %v777, %v748
  %v825 = vmul.f32 %v781, %v747
  %v826 = vmul.f32 %v785, %v746
  %v827 = vmul.f32 %v789, %v745
  %v828 = vmul.f32 %v793, %v744
  %v829 = vmul.f32 %v797, %v743
  %v830 = vmul.f32 %v801, %v742
  %v831 = vmul.f32 %v805, %v741
  %v832 = vmul.f32 %v809, %v740
  %v833 = vmul.f32 %v813, %v739
  %v834 = vmul.f32 %v817, %v754
  %v835 = vadd.f32 %v644, %v819
  %v836 = vadd.f32 %v649, %v820
  %v837 = vadd.f32 %v654, %v821
  %v838 = vadd.f32 %v659, %v822
  %v839 = vadd.f32 %v664, %v823
  %v840 = vadd.f32 %v669, %v824
  %v841 = vadd.f32 %v674, %v825
  %v842 = vadd.f32 %v679, %v826
  %v843 = vadd.f32 %v684, %v827
  %v844 = vadd.f32 %v689, %v828
  %v845 = vadd.f32 %v694, %v829
  %v846 = vadd.f32 %v699, %v830
  %v847 = vadd.f32 %v704, %v831
  %v848 = vadd.f32 %v709, %v832
  %v849 = vadd.f32 %v714, %v833
  %v850 = vadd.f32 %v719, %v834
  %v851 = vld [vmem:[%s4] sm:$0x1]
  %v853 = vlaneseq
  %v854 = vshrl.u32 %v853, 7
  %v855 = vsub.s32 0, %v854
  %v856 = vrot.slane %v851, %v855
  %v858 = vadd.f32 %v835, %v856
  %v859 = vadd.f32 %v836, %v856
  %v860 = vadd.f32 %v837, %v856
  %v861 = vadd.f32 %v838, %v856
  %v862 = vadd.f32 %v839, %v856
  %v863 = vadd.f32 %v840, %v856
  %v864 = vadd.f32 %v841, %v856
  %v865 = vadd.f32 %v842, %v856
  %v866 = vadd.f32 %v843, %v856
  %v867 = vadd.f32 %v844, %v856
  %v868 = vadd.f32 %v845, %v856
  %v869 = vadd.f32 %v846, %v856
  %v870 = vadd.f32 %v847, %v856
  %v871 = vadd.f32 %v848, %v856
  %v872 = vadd.f32 %v849, %v856
  %v873 = vadd.f32 %v850, %v856
  %v874 = vmax.f32 %v858, 0.0
  %v875 = vmax.f32 %v859, 0.0
  %v876 = vmax.f32 %v860, 0.0
  %v877 = vmax.f32 %v861, 0.0
  %v878 = vmax.f32 %v862, 0.0
  %v879 = vmax.f32 %v863, 0.0
  %v880 = vmax.f32 %v864, 0.0
  %v881 = vmax.f32 %v865, 0.0
  %v882 = vmax.f32 %v866, 0.0
  %v883 = vmax.f32 %v867, 0.0
  %v884 = vmax.f32 %v868, 0.0
  %v885 = vmax.f32 %v869, 0.0
  %v886 = vmax.f32 %v870, 0.0
  %v887 = vmax.f32 %v871, 0.0
  %v888 = vmax.f32 %v872, 0.0
  %v889 = vmax.f32 %v873, 0.0
  %vm890 = vcmask 261120
  %891 = vst.msk [vmem:[#allocation2] sm:$0xff] %vm890, %v874
  %892 = vst.msk [vmem:[#allocation2 + $0x8] sm:$0xff] %vm890, %v875
  %893 = vst.msk [vmem:[#allocation2 + $0x10] sm:$0xff] %vm890, %v876
  %894 = vst.msk [vmem:[#allocation2 + $0x18] sm:$0xff] %vm890, %v877
  %895 = vst.msk [vmem:[#allocation2 + $0x20] sm:$0xff] %vm890, %v878
  %896 = vst.msk [vmem:[#allocation2 + $0x28] sm:$0xff] %vm890, %v879
  %897 = vst.msk [vmem:[#allocation2 + $0x30] sm:$0xff] %vm890, %v880
  %898 = vst.msk [vmem:[#allocation2 + $0x38] sm:$0xff] %vm890, %v881
  %899 = vst.msk [vmem:[#allocation2 + $0x40] sm:$0xff] %vm890, %v882
  %900 = vst.msk [vmem:[#allocation2 + $0x48] sm:$0xff] %vm890, %v883
  %901 = vst.msk [vmem:[#allocation2 + $0x50] sm:$0xff] %vm890, %v884
  %902 = vst.msk [vmem:[#allocation2 + $0x58] sm:$0xff] %vm890, %v885
  %903 = vst.msk [vmem:[#allocation2 + $0x60] sm:$0xff] %vm890, %v886
  %904 = vst.msk [vmem:[#allocation2 + $0x68] sm:$0xff] %vm890, %v887
  %905 = vst.msk [vmem:[#allocation2 + $0x70] sm:$0xff] %vm890, %v888
  %906 = vst.msk [vmem:[#allocation2 + $0x78] sm:$0xff] %vm890, %v889
  %v907 = vld [vmem:[#allocation2] ss:$2 sm:$0xff]
  %s908 = scalar_lea.vmem [#allocation2], 16
  %v909 = vld [vmem:[%s908] ss:$2 sm:$0xff]
  %s910 = scalar_lea.vmem [#allocation2], 32
  %v911 = vld [vmem:[%s910] ss:$2 sm:$0xff]
  %s912 = scalar_lea.vmem [#allocation2], 48
  %v913 = vld [vmem:[%s912] ss:$2 sm:$0xff]
  %s914 = scalar_lea.vmem [#allocation2], 64
  %v915 = vld [vmem:[%s914] ss:$2 sm:$0xff]
  %s916 = scalar_lea.vmem [#allocation2], 80
  %v917 = vld [vmem:[%s916] ss:$2 sm:$0xff]
  %s918 = scalar_lea.vmem [#allocation2], 96
  %v919 = vld [vmem:[%s918] ss:$2 sm:$0xff]
  %s920 = scalar_lea.vmem [#allocation2], 112
  %v921 = vld [vmem:[%s920] ss:$2 sm:$0xff]
  %s922 = scalar_lea.vmem [#allocation2], 1
  %v923 = vld [vmem:[%s922] ss:$2 sm:$0xff]
  %s924 = scalar_lea.vmem [#allocation2], 17
  %v925 = vld [vmem:[%s924] ss:$2 sm:$0xff]
  %s926 = scalar_lea.vmem [#allocation2], 33
  %v927 = vld [vmem:[%s926] ss:$2 sm:$0xff]
  %s928 = scalar_lea.vmem [#allocation2], 49
  %v929 = vld [vmem:[%s928] ss:$2 sm:$0xff]
  %s930 = scalar_lea.vmem [#allocation2], 65
  %v931 = vld [vmem:[%s930] ss:$2 sm:$0xff]
  %s932 = scalar_lea.vmem [#allocation2], 81
  %v933 = vld [vmem:[%s932] ss:$2 sm:$0xff]
  %s934 = scalar_lea.vmem [#allocation2], 97
  %v935 = vld [vmem:[%s934] ss:$2 sm:$0xff]
  %s936 = scalar_lea.vmem [#allocation2], 113
  %v937 = vld [vmem:[%s936] ss:$2 sm:$0xff]
  %v938 = vmax.f32 %v907, %v923
  %v939 = vmax.f32 %v909, %v925
  %v940 = vmax.f32 %v911, %v927
  %v941 = vmax.f32 %v913, %v929
  %v942 = vmax.f32 %v915, %v931
  %v943 = vmax.f32 %v917, %v933
  %v944 = vmax.f32 %v919, %v935
  %v945 = vmax.f32 %v921, %v937
  %v946 = vld [vmem:[%s2] sm:$0xff]
  %v947 = vld [vmem:[%s2 + $0x8] sm:$0xff]
  %v948 = vld [vmem:[%s2 + $0x10] sm:$0xff]
  %v949 = vld [vmem:[%s2 + $0x18] sm:$0xff]
  %v950 = vld [vmem:[%s2 + $0x20] sm:$0xff]
  %v951 = vld [vmem:[%s2 + $0x28] sm:$0xff]
  %v952 = vld [vmem:[%s2 + $0x30] sm:$0xff]
  %v953 = vld [vmem:[%s2 + $0x38] sm:$0xff]
  %v954 = vld [vmem:[%s5] sm:$0xff]
  %v955 = vld [vmem:[%s5 + $0x8] sm:$0xff]
  %v956 = vld [vmem:[%s5 + $0x10] sm:$0xff]
  %v957 = vld [vmem:[%s5 + $0x18] sm:$0xff]
  %v959 = vsel %vm890, %v938, 0
  %v962 = vsel %vm890, %v939, 0
  %v965 = vsel %vm890, %v940, 0
  %v968 = vsel %vm890, %v941, 0
  %v971 = vsel %vm890, %v942, 0
  %v974 = vsel %vm890, %v943, 0
  %v977 = vsel %vm890, %v944, 0
  %v980 = vsel %vm890, %v945, 0
  %982 = vmatprep.subr.mxu0 0.0
  %983 = vmatpush1.msra.mxu0 %v954
  %984 = vmatprep.subr.mxu0 0.0
  %985 = vmatpush1.msra.mxu0 %v955
  %986 = vmatprep.subr.mxu0 0.0
  %987 = vmatpush1.msra.mxu0 %v956
  %988 = vmatprep.subr.mxu0 0.0
  %989 = vmatpush1.msra.mxu0 %v957
  %990 = vmatprep.subr.mxu0 0.0
  %991 = vmatpush1.msra.mxu0 0.0
  %992 = vmatprep.subr.mxu0 0.0
  %993 = vmatpush1.msra.mxu0 0.0
  %994 = vmatprep.subr.mxu0 0.0
  %995 = vmatpush1.msra.mxu0 0.0
  %996 = vmatprep.subr.mxu0 0.0
  %997 = vmatpush1.msra.mxu0 0.0
  %998 = vmatprep.subr.mxu0 0.0
  %999 = vmatpush1.msra.mxu0 0.0
  %1000 = vmatprep.subr.mxu0 0.0
  %1001 = vmatpush1.msra.mxu0 0.0
  %1002 = vmatprep.subr.mxu0 0.0
  %1003 = vmatpush1.msra.mxu0 0.0
  %1004 = vmatprep.subr.mxu0 0.0
  %1005 = vmatpush1.msra.mxu0 0.0
  %1006 = vmatprep.subr.mxu0 0.0
  %1007 = vmatpush1.msra.mxu0 0.0
  %1008 = vmatprep.subr.mxu0 0.0
  %1009 = vmatpush1.msra.mxu0 0.0
  %1010 = vmatprep.subr.mxu0 0.0
  %1011 = vmatpush1.msra.mxu0 0.0
  %1012 = vmatprep.subr.mxu0 0.0
  %1013 = vmatpush1.msra.mxu0 0.0
  %1014 = vmatprep.subr.mxu0 0.0
  %1015 = vmatpush1.msra.mxu0 0.0
  %1016 = vmatprep.subr.mxu0 0.0
  %1017 = vmatpush1.msra.mxu0 0.0
  %1018 = vmatprep.subr.mxu0 0.0
  %1019 = vmatpush1.msra.mxu0 0.0
  %1020 = vmatprep.subr.mxu0 0.0
  %1021 = vmatpush1.msra.mxu0 0.0
  %1022 = vmatprep.subr.mxu0 0.0
  %1023 = vmatpush1.msra.mxu0 0.0
  %1024 = vmatprep.subr.mxu0 0.0
  %1025 = vmatpush1.msra.mxu0 0.0
  %1026 = vmatprep.subr.mxu0 0.0
  %1027 = vmatpush1.msra.mxu0 0.0
  %1028 = vmatprep.subr.mxu0 0.0
  %1029 = vmatpush1.msra.mxu0 0.0
  %1030 = vmatprep.subr.mxu0 0.0
  %1031 = vmatpush1.msra.mxu0 0.0
  %1032 = vmatprep.subr.mxu0 0.0
  %1033 = vmatpush1.msra.mxu0 0.0
  %1034 = vmatprep.subr.mxu0 0.0
  %1035 = vmatpush1.msra.mxu0 0.0
  %1036 = vmatprep.subr.mxu0 0.0
  %1037 = vmatpush1.msra.mxu0 0.0
  %1038 = vmatprep.subr.mxu0 0.0
  %1039 = vmatpush1.msra.mxu0 0.0
  %1040 = vmatprep.subr.mxu0 0.0
  %1041 = vmatpush1.msra.mxu0 0.0
  %1042 = vmatprep.subr.mxu0 0.0
  %1043 = vmatpush1.msra.mxu0 0.0
  %1044 = vmatprep.subr.mxu0 0.0
  %1045 = vmatpush1.msra.mxu0 0.0
  %1046 = vmatprep.mubr.f32.mxu0 0.0
  %1047 = vmatmul.mubr.f32.gmra.mrb[0].mxu0 %v959
  %v1048 = vpop.f32.mrb[0].mxu0
  %v1049 = vadd.f32 0.0, %v1048
  %v1050 = vpop.f32.mrb[0].mxu0
  %1051 = vmatprep.mubr.f32.mxu0 0.0
  %1052 = vmatmul.mubr.f32.gmra.mrb[0].mxu0 %v962
  %v1053 = vpop.f32.mrb[0].mxu0
  %v1054 = vadd.f32 0.0, %v1053
  %v1055 = vpop.f32.mrb[0].mxu0
  %1056 = vmatprep.mubr.f32.mxu0 0.0
  %1057 = vmatmul.mubr.f32.gmra.mrb[0].mxu0 %v965
  %v1058 = vpop.f32.mrb[0].mxu0
  %v1059 = vadd.f32 0.0, %v1058
  %v1060 = vpop.f32.mrb[0].mxu0
  %1061 = vmatprep.mubr.f32.mxu0 0.0
  %1062 = vmatmul.mubr.f32.gmra.mrb[0].mxu0 %v968
  %v1063 = vpop.f32.mrb[0].mxu0
  %v1064 = vadd.f32 0.0, %v1063
  %v1065 = vpop.f32.mrb[0].mxu0
  %1066 = vmatprep.mubr.f32.mxu0 0.0
  %1067 = vmatmul.mubr.f32.gmra.mrb[0].mxu0 %v971
  %v1068 = vpop.f32.mrb[0].mxu0
  %v1069 = vadd.f32 0.0, %v1068
  %v1070 = vpop.f32.mrb[0].mxu0
  %1071 = vmatprep.mubr.f32.mxu0 0.0
  %1072 = vmatmul.mubr.f32.gmra.mrb[0].mxu0 %v974
  %v1073 = vpop.f32.mrb[0].mxu0
  %v1074 = vadd.f32 0.0, %v1073
  %v1075 = vpop.f32.mrb[0].mxu0
  %1076 = vmatprep.mubr.f32.mxu0 0.0
  %1077 = vmatmul.mubr.f32.gmra.mrb[0].mxu0 %v977
  %v1078 = vpop.f32.mrb[0].mxu0
  %v1079 = vadd.f32 0.0, %v1078
  %v1080 = vpop.f32.mrb[0].mxu0
  %1081 = vmatprep.mubr.f32.mxu0 0.0
  %1082 = vmatmul.mubr.f32.gmra.mrb[0].mxu0 %v980
  %v1083 = vpop.f32.mrb[0].mxu0
  %v1084 = vadd.f32 0.0, %v1083
  %v1085 = vpop.f32.mrb[0].mxu0
  %1086 = vdwg.mxu0
  %s1087 = scalar_lea.vmem %s5, 32
  %v1088 = vld [vmem:[%s1087] sm:$0xff]
  %v1089 = vld [vmem:[%s1087 + $0x8] sm:$0xff]
  %v1090 = vld [vmem:[%s1087 + $0x10] sm:$0xff]
  %v1091 = vld [vmem:[%s1087 + $0x18] sm:$0xff]
  %s1092 = scalar_lea.vmem %s5, 64
  %v1093 = vld [vmem:[%s1092] sm:$0xff]
  %v1094 = vld [vmem:[%s1092 + $0x8] sm:$0xff]
  %v1095 = vld [vmem:[%s1092 + $0x10] sm:$0xff]
  %v1096 = vld [vmem:[%s1092 + $0x18] sm:$0xff]
  %1097 = vmatprep.subr.mxu0 0.0
  %1098 = vmatpush1.msra.mxu0 %v1093
  %1099 = vmatprep.subr.mxu0 0.0
  %1100 = vmatpush1.msra.mxu0 %v1094
  %1101 = vmatprep.subr.mxu0 0.0
  %1102 = vmatpush1.msra.mxu0 %v1095
  %1103 = vmatprep.subr.mxu0 0.0
  %1104 = vmatpush1.msra.mxu0 %v1096
  %1105 = vmatprep.subr.mxu0 0.0
  %1106 = vmatpush1.msra.mxu0 0.0
  %1107 = vmatprep.subr.mxu0 0.0
  %1108 = vmatpush1.msra.mxu0 0.0
  %1109 = vmatprep.subr.mxu0 0.0
  %1110 = vmatpush1.msra.mxu0 0.0
  %1111 = vmatprep.subr.mxu0 0.0
  %1112 = vmatpush1.msra.mxu0 0.0
  %1113 = vmatprep.subr.mxu0 0.0
  %1114 = vmatpush1.msra.mxu0 0.0
  %1115 = vmatprep.subr.mxu0 0.0
  %1116 = vmatpush1.msra.mxu0 0.0
  %1117 = vmatprep.subr.mxu0 0.0
  %1118 = vmatpush1.msra.mxu0 0.0
  %1119 = vmatprep.subr.mxu0 0.0
  %1120 = vmatpush1.msra.mxu0 0.0
  %1121 = vmatprep.subr.mxu0 0.0
  %1122 = vmatpush1.msra.mxu0 0.0
  %1123 = vmatprep.subr.mxu0 0.0
  %1124 = vmatpush1.msra.mxu0 0.0
  %1125 = vmatprep.subr.mxu0 0.0
  %1126 = vmatpush1.msra.mxu0 0.0
  %1127 = vmatprep.subr.mxu0 0.0
  %1128 = vmatpush1.msra.mxu0 0.0
  %1129 = vmatprep.subr.mxu0 0.0
  %1130 = vmatpush1.msra.mxu0 0.0
  %1131 = vmatprep.subr.mxu0 0.0
  %1132 = vmatpush1.msra.mxu0 0.0
  %1133 = vmatprep.subr.mxu0 0.0
  %1134 = vmatpush1.msra.mxu0 0.0
  %1135 = vmatprep.subr.mxu0 0.0
  %1136 = vmatpush1.msra.mxu0 0.0
  %1137 = vmatprep.subr.mxu0 0.0
  %1138 = vmatpush1.msra.mxu0 0.0
  %1139 = vmatprep.subr.mxu0 0.0
  %1140 = vmatpush1.msra.mxu0 0.0
  %1141 = vmatprep.subr.mxu0 0.0
  %1142 = vmatpush1.msra.mxu0 0.0
  %1143 = vmatprep.subr.mxu0 0.0
  %1144 = vmatpush1.msra.mxu0 0.0
  %1145 = vmatprep.subr.mxu0 0.0
  %1146 = vmatpush1.msra.mxu0 0.0
  %1147 = vmatprep.subr.mxu0 0.0
  %1148 = vmatpush1.msra.mxu0 0.0
  %1149 = vmatprep.subr.mxu0 0.0
  %1150 = vmatpush1.msra.mxu0 0.0
  %1151 = vmatprep.subr.mxu0 0.0
  %1152 = vmatpush1.msra.mxu0 0.0
  %1153 = vmatprep.subr.mxu0 0.0
  %1154 = vmatpush1.msra.mxu0 0.0
  %1155 = vmatprep.subr.mxu0 0.0
  %1156 = vmatpush1.msra.mxu0 0.0
  %1157 = vmatprep.subr.mxu0 0.0
  %1158 = vmatpush1.msra.mxu0 0.0
  %1159 = vmatprep.subr.mxu0 0.0
  %1160 = vmatpush1.msra.mxu0 0.0
  %1161 = vmatprep.mubr.f32.mxu0 0.0
  %1162 = vmatmul.mubr.f32.gmra.mrb[0].mxu0 %v959
  %v1163 = vpop.f32.mrb[0].mxu0
  %v1164 = vadd.f32 0.0, %v1163
  %v1165 = vpop.f32.mrb[0].mxu0
  %1166 = vmatprep.mubr.f32.mxu0 0.0
  %1167 = vmatmul.mubr.f32.gmra.mrb[0].mxu0 %v962
  %v1168 = vpop.f32.mrb[0].mxu0
  %v1169 = vadd.f32 0.0, %v1168
  %v1170 = vpop.f32.mrb[0].mxu0
  %1171 = vmatprep.mubr.f32.mxu0 0.0
  %1172 = vmatmul.mubr.f32.gmra.mrb[0].mxu0 %v965
  %v1173 = vpop.f32.mrb[0].mxu0
  %v1174 = vadd.f32 0.0, %v1173
  %v1175 = vpop.f32.mrb[0].mxu0
  %1176 = vmatprep.mubr.f32.mxu0 0.0
  %1177 = vmatmul.mubr.f32.gmra.mrb[0].mxu0 %v968
  %v1178 = vpop.f32.mrb[0].mxu0
  %v1179 = vadd.f32 0.0, %v1178
  %v1180 = vpop.f32.mrb[0].mxu0
  %1181 = vmatprep.mubr.f32.mxu0 0.0
  %1182 = vmatmul.mubr.f32.gmra.mrb[0].mxu0 %v971
  %v1183 = vpop.f32.mrb[0].mxu0
  %v1184 = vadd.f32 0.0, %v1183
  %v1185 = vpop.f32.mrb[0].mxu0
  %1186 = vmatprep.mubr.f32.mxu0 0.0
  %1187 = vmatmul.mubr.f32.gmra.mrb[0].mxu0 %v974
  %v1188 = vpop.f32.mrb[0].mxu0
  %v1189 = vadd.f32 0.0, %v1188
  %v1190 = vpop.f32.mrb[0].mxu0
  %1191 = vmatprep.mubr.f32.mxu0 0.0
  %1192 = vmatmul.mubr.f32.gmra.mrb[0].mxu0 %v977
  %v1193 = vpop.f32.mrb[0].mxu0
  %v1194 = vadd.f32 0.0, %v1193
  %v1195 = vpop.f32.mrb[0].mxu0
  %1196 = vmatprep.mubr.f32.mxu0 0.0
  %1197 = vmatmul.mubr.f32.gmra.mrb[0].mxu0 %v980
  %v1198 = vpop.f32.mrb[0].mxu0
  %v1199 = vadd.f32 0.0, %v1198
  %v1200 = vpop.f32.mrb[0].mxu0
  %1201 = vdwg.mxu0
  %v1202 = vrot.slane %v1049, 7
  %v1203 = vrot.slane %v1054, 7
  %v1204 = vrot.slane %v1059, 7
  %v1205 = vrot.slane %v1064, 7
  %v1206 = vrot.slane %v1069, 7
  %v1207 = vrot.slane %v1074, 7
  %v1208 = vrot.slane %v1079, 7
  %v1209 = vrot.slane %v1084, 7
  %v1210 = vsel %vm461, %v1208, %v1209
  %v1211 = vsel %vm461, %v1207, %v1208
  %v1212 = vsel %vm461, %v1206, %v1207
  %v1213 = vsel %vm461, %v1205, %v1206
  %v1214 = vsel %vm461, %v1204, %v1205
  %v1215 = vsel %vm461, %v1203, %v1204
  %v1216 = vsel %vm461, %v1202, %v1203
  %v1217 = vsel %vm461, %v1209, %v1202
  %1219 = vset.pattern.permute.xlu0 2
  %1220 = vperm.xlu0 %1219, %v946
  %v1221 = vpop.permute.xlu0 %1220
  %1224 = vset.pattern.permute.xlu0 2
  %1225 = vperm.xlu0 %1224, %v947
  %v1226 = vpop.permute.xlu0 %1225
  %1229 = vset.pattern.permute.xlu0 2
  %1230 = vperm.xlu0 %1229, %v948
  %v1231 = vpop.permute.xlu0 %1230
  %1234 = vset.pattern.permute.xlu0 2
  %1235 = vperm.xlu0 %1234, %v949
  %v1236 = vpop.permute.xlu0 %1235
  %1239 = vset.pattern.permute.xlu0 2
  %1240 = vperm.xlu0 %1239, %v950
  %v1241 = vpop.permute.xlu0 %1240
  %1244 = vset.pattern.permute.xlu0 2
  %1245 = vperm.xlu0 %1244, %v951
  %v1246 = vpop.permute.xlu0 %1245
  %1249 = vset.pattern.permute.xlu0 2
  %1250 = vperm.xlu0 %1249, %v952
  %v1251 = vpop.permute.xlu0 %1250
  %1254 = vset.pattern.permute.xlu0 2
  %1255 = vperm.xlu0 %1254, %v953
  %v1256 = vpop.permute.xlu0 %1255
  %v1258 = vmul.f32 %v1221, %v1217
  %v1259 = vmul.f32 %v1226, %v1216
  %v1260 = vmul.f32 %v1231, %v1215
  %v1261 = vmul.f32 %v1236, %v1214
  %v1262 = vmul.f32 %v1241, %v1213
  %v1263 = vmul.f32 %v1246, %v1212
  %v1264 = vmul.f32 %v1251, %v1211
  %v1265 = vmul.f32 %v1256, %v1210
  %1266 = vmatprep.subr.mxu0 0.0
  %1267 = vmatpush1.msra.mxu0 %v1088
  %1268 = vmatprep.subr.mxu0 0.0
  %1269 = vmatpush1.msra.mxu0 %v1089
  %1270 = vmatprep.subr.mxu0 0.0
  %1271 = vmatpush1.msra.mxu0 %v1090
  %1272 = vmatprep.subr.mxu0 0.0
  %1273 = vmatpush1.msra.mxu0 %v1091
  %1274 = vmatprep.subr.mxu0 0.0
  %1275 = vmatpush1.msra.mxu0 0.0
  %1276 = vmatprep.subr.mxu0 0.0
  %1277 = vmatpush1.msra.mxu0 0.0
  %1278 = vmatprep.subr.mxu0 0.0
  %1279 = vmatpush1.msra.mxu0 0.0
  %1280 = vmatprep.subr.mxu0 0.0
  %1281 = vmatpush1.msra.mxu0 0.0
  %1282 = vmatprep.subr.mxu0 0.0
  %1283 = vmatpush1.msra.mxu0 0.0
  %1284 = vmatprep.subr.mxu0 0.0
  %1285 = vmatpush1.msra.mxu0 0.0
  %1286 = vmatprep.subr.mxu0 0.0
  %1287 = vmatpush1.msra.mxu0 0.0
  %1288 = vmatprep.subr.mxu0 0.0
  %1289 = vmatpush1.msra.mxu0 0.0
  %1290 = vmatprep.subr.mxu0 0.0
  %1291 = vmatpush1.msra.mxu0 0.0
  %1292 = vmatprep.subr.mxu0 0.0
  %1293 = vmatpush1.msra.mxu0 0.0
  %1294 = vmatprep.subr.mxu0 0.0
  %1295 = vmatpush1.msra.mxu0 0.0
  %1296 = vmatprep.subr.mxu0 0.0
  %1297 = vmatpush1.msra.mxu0 0.0
  %1298 = vmatprep.subr.mxu0 0.0
  %1299 = vmatpush1.msra.mxu0 0.0
  %1300 = vmatprep.subr.mxu0 0.0
  %1301 = vmatpush1.msra.mxu0 0.0
  %1302 = vmatprep.subr.mxu0 0.0
  %1303 = vmatpush1.msra.mxu0 0.0
  %1304 = vmatprep.subr.mxu0 0.0
  %1305 = vmatpush1.msra.mxu0 0.0
  %1306 = vmatprep.subr.mxu0 0.0
  %1307 = vmatpush1.msra.mxu0 0.0
  %1308 = vmatprep.subr.mxu0 0.0
  %1309 = vmatpush1.msra.mxu0 0.0
  %1310 = vmatprep.subr.mxu0 0.0
  %1311 = vmatpush1.msra.mxu0 0.0
  %1312 = vmatprep.subr.mxu0 0.0
  %1313 = vmatpush1.msra.mxu0 0.0
  %1314 = vmatprep.subr.mxu0 0.0
  %1315 = vmatpush1.msra.mxu0 0.0
  %1316 = vmatprep.subr.mxu0 0.0
  %1317 = vmatpush1.msra.mxu0 0.0
  %1318 = vmatprep.subr.mxu0 0.0
  %1319 = vmatpush1.msra.mxu0 0.0
  %1320 = vmatprep.subr.mxu0 0.0
  %1321 = vmatpush1.msra.mxu0 0.0
  %1322 = vmatprep.subr.mxu0 0.0
  %1323 = vmatpush1.msra.mxu0 0.0
  %1324 = vmatprep.subr.mxu0 0.0
  %1325 = vmatpush1.msra.mxu0 0.0
  %1326 = vmatprep.subr.mxu0 0.0
  %1327 = vmatpush1.msra.mxu0 0.0
  %1328 = vmatprep.subr.mxu0 0.0
  %1329 = vmatpush1.msra.mxu0 0.0
  %1330 = vmatprep.mubr.f32.mxu0 0.0
  %1331 = vmatmul.mubr.f32.gmra.mrb[0].mxu0 %v959
  %v1332 = vpop.f32.mrb[0].mxu0
  %v1333 = vadd.f32 %v1258, %v1332
  %v1334 = vpop.f32.mrb[0].mxu0
  %1335 = vmatprep.mubr.f32.mxu0 0.0
  %1336 = vmatmul.mubr.f32.gmra.mrb[0].mxu0 %v962
  %v1337 = vpop.f32.mrb[0].mxu0
  %v1338 = vadd.f32 %v1259, %v1337
  %v1339 = vpop.f32.mrb[0].mxu0
  %1340 = vmatprep.mubr.f32.mxu0 0.0
  %1341 = vmatmul.mubr.f32.gmra.mrb[0].mxu0 %v965
  %v1342 = vpop.f32.mrb[0].mxu0
  %v1343 = vadd.f32 %v1260, %v1342
  %v1344 = vpop.f32.mrb[0].mxu0
  %1345 = vmatprep.mubr.f32.mxu0 0.0
  %1346 = vmatmul.mubr.f32.gmra.mrb[0].mxu0 %v968
  %v1347 = vpop.f32.mrb[0].mxu0
  %v1348 = vadd.f32 %v1261, %v1347
  %v1349 = vpop.f32.mrb[0].mxu0
  %1350 = vmatprep.mubr.f32.mxu0 0.0
  %1351 = vmatmul.mubr.f32.gmra.mrb[0].mxu0 %v971
  %v1352 = vpop.f32.mrb[0].mxu0
  %v1353 = vadd.f32 %v1262, %v1352
  %v1354 = vpop.f32.mrb[0].mxu0
  %1355 = vmatprep.mubr.f32.mxu0 0.0
  %1356 = vmatmul.mubr.f32.gmra.mrb[0].mxu0 %v974
  %v1357 = vpop.f32.mrb[0].mxu0
  %v1358 = vadd.f32 %v1263, %v1357
  %v1359 = vpop.f32.mrb[0].mxu0
  %1360 = vmatprep.mubr.f32.mxu0 0.0
  %1361 = vmatmul.mubr.f32.gmra.mrb[0].mxu0 %v977
  %v1362 = vpop.f32.mrb[0].mxu0
  %v1363 = vadd.f32 %v1264, %v1362
  %v1364 = vpop.f32.mrb[0].mxu0
  %1365 = vmatprep.mubr.f32.mxu0 0.0
  %1366 = vmatmul.mubr.f32.gmra.mrb[0].mxu0 %v980
  %v1367 = vpop.f32.mrb[0].mxu0
  %v1368 = vadd.f32 %v1265, %v1367
  %v1369 = vpop.f32.mrb[0].mxu0
  %1370 = vdwg.mxu0
  %v1371 = vrot.slane %v1164, 1
  %v1372 = vrot.slane %v1169, 1
  %v1373 = vrot.slane %v1174, 1
  %v1374 = vrot.slane %v1179, 1
  %v1375 = vrot.slane %v1184, 1
  %v1376 = vrot.slane %v1189, 1
  %v1377 = vrot.slane %v1194, 1
  %v1378 = vrot.slane %v1199, 1
  %v1379 = vsel %vm738, %v1377, %v1378
  %v1380 = vsel %vm738, %v1376, %v1377
  %v1381 = vsel %vm738, %v1375, %v1376
  %v1382 = vsel %vm738, %v1374, %v1375
  %v1383 = vsel %vm738, %v1373, %v1374
  %v1384 = vsel %vm738, %v1372, %v1373
  %v1385 = vsel %vm738, %v1371, %v1372
  %v1386 = vsel %vm738, %v1378, %v1371
  %1387 = vset.pattern.permute.xlu0 3
  %1388 = vperm.xlu0 %1387, %v946
  %v1389 = vpop.permute.xlu0 %1388
  %1391 = vset.pattern.permute.xlu0 3
  %1392 = vperm.xlu0 %1391, %v947
  %v1393 = vpop.permute.xlu0 %1392
  %1395 = vset.pattern.permute.xlu0 3
  %1396 = vperm.xlu0 %1395, %v948
  %v1397 = vpop.permute.xlu0 %1396
  %1399 = vset.pattern.permute.xlu0 3
  %1400 = vperm.xlu0 %1399, %v949
  %v1401 = vpop.permute.xlu0 %1400
  %1403 = vset.pattern.permute.xlu0 3
  %1404 = vperm.xlu0 %1403, %v950
  %v1405 = vpop.permute.xlu0 %1404
  %1407 = vset.pattern.permute.xlu0 3
  %1408 = vperm.xlu0 %1407, %v951
  %v1409 = vpop.permute.xlu0 %1408
  %1411 = vset.pattern.permute.xlu0 3
  %1412 = vperm.xlu0 %1411, %v952
  %v1413 = vpop.permute.xlu0 %1412
  %1415 = vset.pattern.permute.xlu0 3
  %1416 = vperm.xlu0 %1415, %v953
  %v1417 = vpop.permute.xlu0 %1416
  %v1419 = vmul.f32 %v1389, %v1385
  %v1420 = vmul.f32 %v1393, %v1384
  %v1421 = vmul.f32 %v1397, %v1383
  %v1422 = vmul.f32 %v1401, %v1382
  %v1423 = vmul.f32 %v1405, %v1381
  %v1424 = vmul.f32 %v1409, %v1380
  %v1425 = vmul.f32 %v1413, %v1379
  %v1426 = vmul.f32 %v1417, %v1386
  %v1427 = vadd.f32 %v1333, %v1419
  %v1428 = vadd.f32 %v1338, %v1420
  %v1429 = vadd.f32 %v1343, %v1421
  %v1430 = vadd.f32 %v1348, %v1422
  %v1431 = vadd.f32 %v1353, %v1423
  %v1432 = vadd.f32 %v1358, %v1424
  %v1433 = vadd.f32 %v1363, %v1425
  %v1434 = vadd.f32 %v1368, %v1426
  %v1435 = vld [vmem:[%s6] sm:$0x1]
  %v1437 = vlaneseq
  %v1438 = vshrl.u32 %v1437, 7
  %v1439 = vsub.s32 0, %v1438
  %v1440 = vrot.slane %v1435, %v1439
  %v1442 = vadd.f32 %v1427, %v1440
  %v1443 = vadd.f32 %v1428, %v1440
  %v1444 = vadd.f32 %v1429, %v1440
  %v1445 = vadd.f32 %v1430, %v1440
  %v1446 = vadd.f32 %v1431, %v1440
  %v1447 = vadd.f32 %v1432, %v1440
  %v1448 = vadd.f32 %v1433, %v1440
  %v1449 = vadd.f32 %v1434, %v1440
  %v1450 = vmax.f32 %v1442, 0.0
  %v1451 = vmax.f32 %v1443, 0.0
  %v1452 = vmax.f32 %v1444, 0.0
  %v1453 = vmax.f32 %v1445, 0.0
  %v1454 = vmax.f32 %v1446, 0.0
  %v1455 = vmax.f32 %v1447, 0.0
  %v1456 = vmax.f32 %v1448, 0.0
  %v1457 = vmax.f32 %v1449, 0.0
  %vm1458 = vcmask 523264
  %1459 = vst.msk [vmem:[#allocation3] sm:$0xff] %vm1458, %v1450
  %1460 = vst.msk [vmem:[#allocation3 + $0x8] sm:$0xff] %vm1458, %v1451
  %1461 = vst.msk [vmem:[#allocation3 + $0x10] sm:$0xff] %vm1458, %v1452
  %1462 = vst.msk [vmem:[#allocation3 + $0x18] sm:$0xff] %vm1458, %v1453
  %1463 = vst.msk [vmem:[#allocation3 + $0x20] sm:$0xff] %vm1458, %v1454
  %1464 = vst.msk [vmem:[#allocation3 + $0x28] sm:$0xff] %vm1458, %v1455
  %1465 = vst.msk [vmem:[#allocation3 + $0x30] sm:$0xff] %vm1458, %v1456
  %1466 = vst.msk [vmem:[#allocation3 + $0x38] sm:$0xff] %vm1458, %v1457
  %v1467 = vld [vmem:[#allocation3] ss:$2 sm:$0xff]
  %s1468 = scalar_lea.vmem [#allocation3], 16
  %v1469 = vld [vmem:[%s1468] ss:$2 sm:$0xff]
  %s1470 = scalar_lea.vmem [#allocation3], 32
  %v1471 = vld [vmem:[%s1470] ss:$2 sm:$0xff]
  %s1472 = scalar_lea.vmem [#allocation3], 48
  %v1473 = vld [vmem:[%s1472] ss:$2 sm:$0xff]
  %s1474 = scalar_lea.vmem [#allocation3], 1
  %v1475 = vld [vmem:[%s1474] ss:$2 sm:$0xff]
  %s1476 = scalar_lea.vmem [#allocation3], 17
  %v1477 = vld [vmem:[%s1476] ss:$2 sm:$0xff]
  %s1478 = scalar_lea.vmem [#allocation3], 33
  %v1479 = vld [vmem:[%s1478] ss:$2 sm:$0xff]
  %s1480 = scalar_lea.vmem [#allocation3], 49
  %v1481 = vld [vmem:[%s1480] ss:$2 sm:$0xff]
  %v1482 = vmax.f32 %v1467, %v1475
  %v1483 = vmax.f32 %v1469, %v1477
  %v1484 = vmax.f32 %v1471, %v1479
  %v1485 = vmax.f32 %v1473, %v1481
  %v1486 = vld [vmem:[%s2] sm:$0xff]
  %v1487 = vld [vmem:[%s2 + $0x8] sm:$0xff]
  %v1488 = vld [vmem:[%s2 + $0x10] sm:$0xff]
  %v1489 = vld [vmem:[%s2 + $0x18] sm:$0xff]
  %v1490 = vld [vmem:[%s7] sm:$0xff]
  %v1491 = vld [vmem:[%s7 + $0x8] sm:$0xff]
  %v1492 = vld [vmem:[%s7 + $0x10] sm:$0xff]
  %v1493 = vld [vmem:[%s7 + $0x18] sm:$0xff]
  %v1494 = vld [vmem:[%s7 + $0x20] sm:$0xff]
  %v1495 = vld [vmem:[%s7 + $0x28] sm:$0xff]
  %v1496 = vld [vmem:[%s7 + $0x30] sm:$0xff]
  %v1497 = vld [vmem:[%s7 + $0x38] sm:$0xff]
  %v1499 = vsel %vm1458, %v1482, 0
  %v1502 = vsel %vm1458, %v1483, 0
  %v1505 = vsel %vm1458, %v1484, 0
  %v1508 = vsel %vm1458, %v1485, 0
  %1510 = vmatprep.subr.mxu0 0.0
  %1511 = vmatpush1.msra.mxu0 %v1490
  %1512 = vmatprep.subr.mxu0 0.0
  %1513 = vmatpush1.msra.mxu0 %v1491
  %1514 = vmatprep.subr.mxu0 0.0
  %1515 = vmatpush1.msra.mxu0 %v1492
  %1516 = vmatprep.subr.mxu0 0.0
  %1517 = vmatpush1.msra.mxu0 %v1493
  %1518 = vmatprep.subr.mxu0 0.0
  %1519 = vmatpush1.msra.mxu0 %v1494
  %1520 = vmatprep.subr.mxu0 0.0
  %1521 = vmatpush1.msra.mxu0 %v1495
  %1522 = vmatprep.subr.mxu0 0.0
  %1523 = vmatpush1.msra.mxu0 %v1496
  %1524 = vmatprep.subr.mxu0 0.0
  %1525 = vmatpush1.msra.mxu0 %v1497
  %1526 = vmatprep.subr.mxu0 0.0
  %1527 = vmatpush1.msra.mxu0 0.0
  %1528 = vmatprep.subr.mxu0 0.0
  %1529 = vmatpush1.msra.mxu0 0.0
  %1530 = vmatprep.subr.mxu0 0.0
  %1531 = vmatpush1.msra.mxu0 0.0
  %1532 = vmatprep.subr.mxu0 0.0
  %1533 = vmatpush1.msra.mxu0 0.0
  %1534 = vmatprep.subr.mxu0 0.0
  %1535 = vmatpush1.msra.mxu0 0.0
  %1536 = vmatprep.subr.mxu0 0.0
  %1537 = vmatpush1.msra.mxu0 0.0
  %1538 = vmatprep.subr.mxu0 0.0
  %1539 = vmatpush1.msra.mxu0 0.0
  %1540 = vmatprep.subr.mxu0 0.0
  %1541 = vmatpush1.msra.mxu0 0.0
  %1542 = vmatprep.subr.mxu0 0.0
  %1543 = vmatpush1.msra.mxu0 0.0
  %1544 = vmatprep.subr.mxu0 0.0
  %1545 = vmatpush1.msra.mxu0 0.0
  %1546 = vmatprep.subr.mxu0 0.0
  %1547 = vmatpush1.msra.mxu0 0.0
  %1548 = vmatprep.subr.mxu0 0.0
  %1549 = vmatpush1.msra.mxu0 0.0
  %1550 = vmatprep.subr.mxu0 0.0
  %1551 = vmatpush1.msra.mxu0 0.0
  %1552 = vmatprep.subr.mxu0 0.0
  %1553 = vmatpush1.msra.mxu0 0.0
  %1554 = vmatprep.subr.mxu0 0.0
  %1555 = vmatpush1.msra.mxu0 0.0
  %1556 = vmatprep.subr.mxu0 0.0
  %1557 = vmatpush1.msra.mxu0 0.0
  %1558 = vmatprep.subr.mxu0 0.0
  %1559 = vmatpush1.msra.mxu0 0.0
  %1560 = vmatprep.subr.mxu0 0.0
  %1561 = vmatpush1.msra.mxu0 0.0
  %1562 = vmatprep.subr.mxu0 0.0
  %1563 = vmatpush1.msra.mxu0 0.0
  %1564 = vmatprep.subr.mxu0 0.0
  %1565 = vmatpush1.msra.mxu0 0.0
  %1566 = vmatprep.subr.mxu0 0.0
  %1567 = vmatpush1.msra.mxu0 0.0
  %1568 = vmatprep.subr.mxu0 0.0
  %1569 = vmatpush1.msra.mxu0 0.0
  %1570 = vmatprep.subr.mxu0 0.0
  %1571 = vmatpush1.msra.mxu0 0.0
  %1572 = vmatprep.subr.mxu0 0.0
  %1573 = vmatpush1.msra.mxu0 0.0
  %1574 = vmatprep.mubr.f32.mxu0 0.0
  %1575 = vmatmul.mubr.f32.gmra.mrb[0].mxu0 %v1499
  %v1576 = vpop.f32.mrb[0].mxu0
  %v1577 = vadd.f32 0.0, %v1576
  %v1578 = vpop.f32.mrb[0].mxu0
  %1579 = vmatprep.mubr.f32.mxu0 0.0
  %1580 = vmatmul.mubr.f32.gmra.mrb[0].mxu0 %v1502
  %v1581 = vpop.f32.mrb[0].mxu0
  %v1582 = vadd.f32 0.0, %v1581
  %v1583 = vpop.f32.mrb[0].mxu0
  %1584 = vmatprep.mubr.f32.mxu0 0.0
  %1585 = vmatmul.mubr.f32.gmra.mrb[0].mxu0 %v1505
  %v1586 = vpop.f32.mrb[0].mxu0
  %v1587 = vadd.f32 0.0, %v1586
  %v1588 = vpop.f32.mrb[0].mxu0
  %1589 = vmatprep.mubr.f32.mxu0 0.0
  %1590 = vmatmul.mubr.f32.gmra.mrb[0].mxu0 %v1508
  %v1591 = vpop.f32.mrb[0].mxu0
  %v1592 = vadd.f32 0.0, %v1591
  %v1593 = vpop.f32.mrb[0].mxu0
  %1594 = vdwg.mxu0
  %s1595 = scalar_lea.vmem %s7, 64
  %v1596 = vld [vmem:[%s1595] sm:$0xff]
  %v1597 = vld [vmem:[%s1595 + $0x8] sm:$0xff]
  %v1598 = vld [vmem:[%s1595 + $0x10] sm:$0xff]
  %v1599 = vld [vmem:[%s1595 + $0x18] sm:$0xff]
  %v1600 = vld [vmem:[%s1595 + $0x20] sm:$0xff]
  %v1601 = vld [vmem:[%s1595 + $0x28] sm:$0xff]
  %v1602 = vld [vmem:[%s1595 + $0x30] sm:$0xff]
  %v1603 = vld [vmem:[%s1595 + $0x38] sm:$0xff]
  %s1604 = scalar_lea.vmem %s7, 128
  %v1605 = vld [vmem:[%s1604] sm:$0xff]
  %v1606 = vld [vmem:[%s1604 + $0x8] sm:$0xff]
  %v1607 = vld [vmem:[%s1604 + $0x10] sm:$0xff]
  %v1608 = vld [vmem:[%s1604 + $0x18] sm:$0xff]
  %v1609 = vld [vmem:[%s1604 + $0x20] sm:$0xff]
  %v1610 = vld [vmem:[%s1604 + $0x28] sm:$0xff]
  %v1611 = vld [vmem:[%s1604 + $0x30] sm:$0xff]
  %v1612 = vld [vmem:[%s1604 + $0x38] sm:$0xff]
  %1613 = vmatprep.subr.mxu0 0.0
  %1614 = vmatpush1.msra.mxu0 %v1605
  %1615 = vmatprep.subr.mxu0 0.0
  %1616 = vmatpush1.msra.mxu0 %v1606
  %1617 = vmatprep.subr.mxu0 0.0
  %1618 = vmatpush1.msra.mxu0 %v1607
  %1619 = vmatprep.subr.mxu0 0.0
  %1620 = vmatpush1.msra.mxu0 %v1608
  %1621 = vmatprep.subr.mxu0 0.0
  %1622 = vmatpush1.msra.mxu0 %v1609
  %1623 = vmatprep.subr.mxu0 0.0
  %1624 = vmatpush1.msra.mxu0 %v1610
  %1625 = vmatprep.subr.mxu0 0.0
  %1626 = vmatpush1.msra.mxu0 %v1611
  %1627 = vmatprep.subr.mxu0 0.0
  %1628 = vmatpush1.msra.mxu0 %v1612
  %1629 = vmatprep.subr.mxu0 0.0
  %1630 = vmatpush1.msra.mxu0 0.0
  %1631 = vmatprep.subr.mxu0 0.0
  %1632 = vmatpush1.msra.mxu0 0.0
  %1633 = vmatprep.subr.mxu0 0.0
  %1634 = vmatpush1.msra.mxu0 0.0
  %1635 = vmatprep.subr.mxu0 0.0
  %1636 = vmatpush1.msra.mxu0 0.0
  %1637 = vmatprep.subr.mxu0 0.0
  %1638 = vmatpush1.msra.mxu0 0.0
  %1639 = vmatprep.subr.mxu0 0.0
  %1640 = vmatpush1.msra.mxu0 0.0
  %1641 = vmatprep.subr.mxu0 0.0
  %1642 = vmatpush1.msra.mxu0 0.0
  %1643 = vmatprep.subr.mxu0 0.0
  %1644 = vmatpush1.msra.mxu0 0.0
  %1645 = vmatprep.subr.mxu0 0.0
  %1646 = vmatpush1.msra.mxu0 0.0
  %1647 = vmatprep.subr.mxu0 0.0
  %1648 = vmatpush1.msra.mxu0 0.0
  %1649 = vmatprep.subr.mxu0 0.0
  %1650 = vmatpush1.msra.mxu0 0.0
  %1651 = vmatprep.subr.mxu0 0.0
  %1652 = vmatpush1.msra.mxu0 0.0
  %1653 = vmatprep.subr.mxu0 0.0
  %1654 = vmatpush1.msra.mxu0 0.0
  %1655 = vmatprep.subr.mxu0 0.0
  %1656 = vmatpush1.msra.mxu0 0.0
  %1657 = vmatprep.subr.mxu0 0.0
  %1658 = vmatpush1.msra.mxu0 0.0
  %1659 = vmatprep.subr.mxu0 0.0
  %1660 = vmatpush1.msra.mxu0 0.0
  %1661 = vmatprep.subr.mxu0 0.0
  %1662 = vmatpush1.msra.mxu0 0.0
  %1663 = vmatprep.subr.mxu0 0.0
  %1664 = vmatpush1.msra.mxu0 0.0
  %1665 = vmatprep.subr.mxu0 0.0
  %1666 = vmatpush1.msra.mxu0 0.0
  %1667 = vmatprep.subr.mxu0 0.0
  %1668 = vmatpush1.msra.mxu0 0.0
  %1669 = vmatprep.subr.mxu0 0.0
  %1670 = vmatpush1.msra.mxu0 0.0
  %1671 = vmatprep.subr.mxu0 0.0
  %1672 = vmatpush1.msra.mxu0 0.0
  %1673 = vmatprep.subr.mxu0 0.0
  %1674 = vmatpush1.msra.mxu0 0.0
  %1675 = vmatprep.subr.mxu0 0.0
  %1676 = vmatpush1.msra.mxu0 0.0
  %1677 = vmatprep.mubr.f32.mxu0 0.0
  %1678 = vmatmul.mubr.f32.gmra.mrb[0].mxu0 %v1499
  %v1679 = vpop.f32.mrb[0].mxu0
  %v1680 = vadd.f32 0.0, %v1679
  %v1681 = vpop.f32.mrb[0].mxu0
  %1682 = vmatprep.mubr.f32.mxu0 0.0
  %1683 = vmatmul.mubr.f32.gmra.mrb[0].mxu0 %v1502
  %v1684 = vpop.f32.mrb[0].mxu0
  %v1685 = vadd.f32 0.0, %v1684
  %v1686 = vpop.f32.mrb[0].mxu0
  %1687 = vmatprep.mubr.f32.mxu0 0.0
  %1688 = vmatmul.mubr.f32.gmra.mrb[0].mxu0 %v1505
  %v1689 = vpop.f32.mrb[0].mxu0
  %v1690 = vadd.f32 0.0, %v1689
  %v1691 = vpop.f32.mrb[0].mxu0
  %1692 = vmatprep.mubr.f32.mxu0 0.0
  %1693 = vmatmul.mubr.f32.gmra.mrb[0].mxu0 %v1508
  %v1694 = vpop.f32.mrb[0].mxu0
  %v1695 = vadd.f32 0.0, %v1694
  %v1696 = vpop.f32.mrb[0].mxu0
  %1697 = vdwg.mxu0
  %v1698 = vrot.slane %v1577, 7
  %v1699 = vrot.slane %v1582, 7
  %v1700 = vrot.slane %v1587, 7
  %v1701 = vrot.slane %v1592, 7
  %v1702 = vsel %vm461, %v1700, %v1701
  %v1703 = vsel %vm461, %v1699, %v1700
  %v1704 = vsel %vm461, %v1698, %v1699
  %v1705 = vsel %vm461, %v1701, %v1698
  %1707 = vset.pattern.permute.xlu0 4
  %1708 = vperm.xlu0 %1707, %v1486
  %v1709 = vpop.permute.xlu0 %1708
  %1712 = vset.pattern.permute.xlu0 4
  %1713 = vperm.xlu0 %1712, %v1487
  %v1714 = vpop.permute.xlu0 %1713
  %1717 = vset.pattern.permute.xlu0 4
  %1718 = vperm.xlu0 %1717, %v1488
  %v1719 = vpop.permute.xlu0 %1718
  %1722 = vset.pattern.permute.xlu0 4
  %1723 = vperm.xlu0 %1722, %v1489
  %v1724 = vpop.permute.xlu0 %1723
  %v1726 = vmul.f32 %v1709, %v1705
  %v1727 = vmul.f32 %v1714, %v1704
  %v1728 = vmul.f32 %v1719, %v1703
  %v1729 = vmul.f32 %v1724, %v1702
  %1730 = vmatprep.subr.mxu0 0.0
  %1731 = vmatpush1.msra.mxu0 %v1596
  %1732 = vmatprep.subr.mxu0 0.0
  %1733 = vmatpush1.msra.mxu0 %v1597
  %1734 = vmatprep.subr.mxu0 0.0
  %1735 = vmatpush1.msra.mxu0 %v1598
  %1736 = vmatprep.subr.mxu0 0.0
  %1737 = vmatpush1.msra.mxu0 %v1599
  %1738 = vmatprep.subr.mxu0 0.0
  %1739 = vmatpush1.msra.mxu0 %v1600
  %1740 = vmatprep.subr.mxu0 0.0
  %1741 = vmatpush1.msra.mxu0 %v1601
  %1742 = vmatprep.subr.mxu0 0.0
  %1743 = vmatpush1.msra.mxu0 %v1602
  %1744 = vmatprep.subr.mxu0 0.0
  %1745 = vmatpush1.msra.mxu0 %v1603
  %1746 = vmatprep.subr.mxu0 0.0
  %1747 = vmatpush1.msra.mxu0 0.0
  %1748 = vmatprep.subr.mxu0 0.0
  %1749 = vmatpush1.msra.mxu0 0.0
  %1750 = vmatprep.subr.mxu0 0.0
  %1751 = vmatpush1.msra.mxu0 0.0
  %1752 = vmatprep.subr.mxu0 0.0
  %1753 = vmatpush1.msra.mxu0 0.0
  %1754 = vmatprep.subr.mxu0 0.0
  %1755 = vmatpush1.msra.mxu0 0.0
  %1756 = vmatprep.subr.mxu0 0.0
  %1757 = vmatpush1.msra.mxu0 0.0
  %1758 = vmatprep.subr.mxu0 0.0
  %1759 = vmatpush1.msra.mxu0 0.0
  %1760 = vmatprep.subr.mxu0 0.0
  %1761 = vmatpush1.msra.mxu0 0.0
  %1762 = vmatprep.subr.mxu0 0.0
  %1763 = vmatpush1.msra.mxu0 0.0
  %1764 = vmatprep.subr.mxu0 0.0
  %1765 = vmatpush1.msra.mxu0 0.0
  %1766 = vmatprep.subr.mxu0 0.0
  %1767 = vmatpush1.msra.mxu0 0.0
  %1768 = vmatprep.subr.mxu0 0.0
  %1769 = vmatpush1.msra.mxu0 0.0
  %1770 = vmatprep.subr.mxu0 0.0
  %1771 = vmatpush1.msra.mxu0 0.0
  %1772 = vmatprep.subr.mxu0 0.0
  %1773 = vmatpush1.msra.mxu0 0.0
  %1774 = vmatprep.subr.mxu0 0.0
  %1775 = vmatpush1.msra.mxu0 0.0
  %1776 = vmatprep.subr.mxu0 0.0
  %1777 = vmatpush1.msra.mxu0 0.0
  %1778 = vmatprep.subr.mxu0 0.0
  %1779 = vmatpush1.msra.mxu0 0.0
  %1780 = vmatprep.subr.mxu0 0.0
  %1781 = vmatpush1.msra.mxu0 0.0
  %1782 = vmatprep.subr.mxu0 0.0
  %1783 = vmatpush1.msra.mxu0 0.0
  %1784 = vmatprep.subr.mxu0 0.0
  %1785 = vmatpush1.msra.mxu0 0.0
  %1786 = vmatprep.subr.mxu0 0.0
  %1787 = vmatpush1.msra.mxu0 0.0
  %1788 = vmatprep.subr.mxu0 0.0
  %1789 = vmatpush1.msra.mxu0 0.0
  %1790 = vmatprep.subr.mxu0 0.0
  %1791 = vmatpush1.msra.mxu0 0.0
  %1792 = vmatprep.subr.mxu0 0.0
  %1793 = vmatpush1.msra.mxu0 0.0
  %1794 = vmatprep.mubr.f32.mxu0 0.0
  %1795 = vmatmul.mubr.f32.gmra.mrb[0].mxu0 %v1499
  %v1796 = vpop.f32.mrb[0].mxu0
  %v1797 = vadd.f32 %v1726, %v1796
  %v1798 = vpop.f32.mrb[0].mxu0
  %1799 = vmatprep.mubr.f32.mxu0 0.0
  %1800 = vmatmul.mubr.f32.gmra.mrb[0].mxu0 %v1502
  %v1801 = vpop.f32.mrb[0].mxu0
  %v1802 = vadd.f32 %v1727, %v1801
  %v1803 = vpop.f32.mrb[0].mxu0
  %1804 = vmatprep.mubr.f32.mxu0 0.0
  %1805 = vmatmul.mubr.f32.gmra.mrb[0].mxu0 %v1505
  %v1806 = vpop.f32.mrb[0].mxu0
  %v1807 = vadd.f32 %v1728, %v1806
  %v1808 = vpop.f32.mrb[0].mxu0
  %1809 = vmatprep.mubr.f32.mxu0 0.0
  %1810 = vmatmul.mubr.f32.gmra.mrb[0].mxu0 %v1508
  %v1811 = vpop.f32.mrb[0].mxu0
  %v1812 = vadd.f32 %v1729, %v1811
  %v1813 = vpop.f32.mrb[0].mxu0
  %1814 = vdwg.mxu0
  %v1815 = vrot.slane %v1680, 1
  %v1816 = vrot.slane %v1685, 1
  %v1817 = vrot.slane %v1690, 1
  %v1818 = vrot.slane %v1695, 1
  %v1819 = vsel %vm738, %v1817, %v1818
  %v1820 = vsel %vm738, %v1816, %v1817
  %v1821 = vsel %vm738, %v1815, %v1816
  %v1822 = vsel %vm738, %v1818, %v1815
  %1823 = vset.pattern.permute.xlu0 5
  %1824 = vperm.xlu0 %1823, %v1486
  %v1825 = vpop.permute.xlu0 %1824
  %1827 = vset.pattern.permute.xlu0 5
  %1828 = vperm.xlu0 %1827, %v1487
  %v1829 = vpop.permute.xlu0 %1828
  %1831 = vset.pattern.permute.xlu0 5
  %1832 = vperm.xlu0 %1831, %v1488
  %v1833 = vpop.permute.xlu0 %1832
  %1835 = vset.pattern.permute.xlu0 5
  %1836 = vperm.xlu0 %1835, %v1489
  %v1837 = vpop.permute.xlu0 %1836
  %v1839 = vmul.f32 %v1825, %v1821
  %v1840 = vmul.f32 %v1829, %v1820
  %v1841 = vmul.f32 %v1833, %v1819
  %v1842 = vmul.f32 %v1837, %v1822
  %v1843 = vadd.f32 %v1797, %v1839
  %v1844 = vadd.f32 %v1802, %v1840
  %v1845 = vadd.f32 %v1807, %v1841
  %v1846 = vadd.f32 %v1812, %v1842
  %v1847 = vld [vmem:[%s8] sm:$0x1]
  %v1849 = vlaneseq
  %v1850 = vshrl.u32 %v1849, 7
  %v1851 = vsub.s32 0, %v1850
  %v1852 = vrot.slane %v1847, %v1851
  %v1854 = vadd.f32 %v1843, %v1852
  %v1855 = vadd.f32 %v1844, %v1852
  %v1856 = vadd.f32 %v1845, %v1852
  %v1857 = vadd.f32 %v1846, %v1852
  %v1858 = vmax.f32 %v1854, 0.0
  %v1859 = vmax.f32 %v1855, 0.0
  %v1860 = vmax.f32 %v1856, 0.0
  %v1861 = vmax.f32 %v1857, 0.0
  %1862 = vst [vmem:[#allocation4] sm:$0xff] %v1858
  %1863 = vst [vmem:[#allocation4 + $0x8] sm:$0xff] %v1859
  %1864 = vst [vmem:[#allocation4 + $0x10] sm:$0xff] %v1860
  %1865 = vst [vmem:[#allocation4 + $0x18] sm:$0xff] %v1861
  %v1866 = vld [vmem:[#allocation4] ss:$4 sm:$0xff]
  %1867 = vst [vmem:[#allocation5] sm:$0xff] %v1866
  %s1868 = scalar_lea.vmem [#allocation4], 1
  %v1869 = vld [vmem:[%s1868] ss:$4 sm:$0xff]
  %1870 = vst [vmem:[#allocation5 + $0x8] sm:$0xff] %v1869
  %s1871 = scalar_lea.vmem [#allocation4], 2
  %v1872 = vld [vmem:[%s1871] ss:$4 sm:$0xff]
  %1873 = vst [vmem:[#allocation5 + $0x10] sm:$0xff] %v1872
  %s1874 = scalar_lea.vmem [#allocation4], 3
  %v1875 = vld [vmem:[%s1874] ss:$4 sm:$0xff]
  %1876 = vst [vmem:[#allocation5 + $0x18] sm:$0xff] %v1875
  %v1877 = vld [vmem:[%s1] sm:$0xff]
  %v1878 = vld [vmem:[%s11] sm:$0x3]
  %v1879 = vld [vmem:[%s12] sm:$0x1]
  %v1881 = vlaneseq
  %v1882 = vshrl.u32 %v1881, 7
  %v1883 = vsub.s32 0, %v1882
  %v1884 = vrot.slane %v1879, %v1883
  %vm1886 = vcmask 15360
  %v1888 = vsel %vm1886, %v1877, 0
  %vm1890 = vcmask 1041408
  %v1892 = vsel %vm1890, %v1878, 0
  %1894 = vmatprep.subr.mxu0 0.0
  %1895 = vmatpush1.msra.mxu0 %v1892
  %1896 = vmatprep.subr.mxu0 0.0
  %1897 = vmatpush1.msra.mxu0 0.0
  %1898 = vmatprep.subr.mxu0 0.0
  %1899 = vmatpush1.msra.mxu0 0.0
  %1900 = vmatprep.subr.mxu0 0.0
  %1901 = vmatpush1.msra.mxu0 0.0
  %1902 = vmatprep.subr.mxu0 0.0
  %1903 = vmatpush1.msra.mxu0 0.0
  %1904 = vmatprep.subr.mxu0 0.0
  %1905 = vmatpush1.msra.mxu0 0.0
  %1906 = vmatprep.subr.mxu0 0.0
  %1907 = vmatpush1.msra.mxu0 0.0
  %1908 = vmatprep.subr.mxu0 0.0
  %1909 = vmatpush1.msra.mxu0 0.0
  %1910 = vmatprep.subr.mxu0 0.0
  %1911 = vmatpush1.msra.mxu0 0.0
  %1912 = vmatprep.subr.mxu0 0.0
  %1913 = vmatpush1.msra.mxu0 0.0
  %1914 = vmatprep.subr.mxu0 0.0
  %1915 = vmatpush1.msra.mxu0 0.0
  %1916 = vmatprep.subr.mxu0 0.0
  %1917 = vmatpush1.msra.mxu0 0.0
  %1918 = vmatprep.subr.mxu0 0.0
  %1919 = vmatpush1.msra.mxu0 0.0
  %1920 = vmatprep.subr.mxu0 0.0
  %1921 = vmatpush1.msra.mxu0 0.0
  %1922 = vmatprep.subr.mxu0 0.0
  %1923 = vmatpush1.msra.mxu0 0.0
  %1924 = vmatprep.subr.mxu0 0.0
  %1925 = vmatpush1.msra.mxu0 0.0
  %1926 = vmatprep.subr.mxu0 0.0
  %1927 = vmatpush1.msra.mxu0 0.0
  %1928 = vmatprep.subr.mxu0 0.0
  %1929 = vmatpush1.msra.mxu0 0.0
  %1930 = vmatprep.subr.mxu0 0.0
  %1931 = vmatpush1.msra.mxu0 0.0
  %1932 = vmatprep.subr.mxu0 0.0
  %1933 = vmatpush1.msra.mxu0 0.0
  %1934 = vmatprep.subr.mxu0 0.0
  %1935 = vmatpush1.msra.mxu0 0.0
  %1936 = vmatprep.subr.mxu0 0.0
  %1937 = vmatpush1.msra.mxu0 0.0
  %1938 = vmatprep.subr.mxu0 0.0
  %1939 = vmatpush1.msra.mxu0 0.0
  %1940 = vmatprep.subr.mxu0 0.0
  %1941 = vmatpush1.msra.mxu0 0.0
  %1942 = vmatprep.subr.mxu0 0.0
  %1943 = vmatpush1.msra.mxu0 0.0
  %1944 = vmatprep.subr.mxu0 0.0
  %1945 = vmatpush1.msra.mxu0 0.0
  %1946 = vmatprep.subr.mxu0 0.0
  %1947 = vmatpush1.msra.mxu0 0.0
  %1948 = vmatprep.subr.mxu0 0.0
  %1949 = vmatpush1.msra.mxu0 0.0
  %1950 = vmatprep.subr.mxu0 0.0
  %1951 = vmatpush1.msra.mxu0 0.0
  %1952 = vmatprep.subr.mxu0 0.0
  %1953 = vmatpush1.msra.mxu0 0.0
  %1954 = vmatprep.subr.mxu0 0.0
  %1955 = vmatpush1.msra.mxu0 0.0
  %1956 = vmatprep.subr.mxu0 0.0
  %1957 = vmatpush1.msra.mxu0 0.0
  %1958 = vmatprep.mubr.f32.mxu0 0.0
  %1959 = vmatmul.mubr.f32.gmra.mrb[0].mxu0 %v1888
  %v1960 = vpop.f32.mrb[0].mxu0
  %v1961 = vadd.f32 %v1884, %v1960
  %v1962 = vpop.f32.mrb[0].mxu0
  %1963 = vdwg.mxu0
  %v1964 = vmax.f32 %v1961, 0.0
  %v1965 = vld [vmem:[#allocation5] sm:$0xff]
  %v1966 = vld [vmem:[#allocation5 + $0x8] sm:$0xff]
  %v1967 = vld [vmem:[#allocation5 + $0x10] sm:$0xff]
  %v1968 = vld [vmem:[#allocation5 + $0x18] sm:$0xff]
  %v1969 = vpack.c.bf16 %v1965, %v1965
  %v1970 = vpack.c.bf16 %v1966, %v1966
  %v1971 = vpack.c.bf16 %v1967, %v1967
  %v1972 = vpack.c.bf16 %v1968, %v1968
  %v1973 = vld [vmem:[%s9] sm:$0xf]
  %v1974 = vld [vmem:[%s9 + $0x4] sm:$0xf]
  %v1975 = vld [vmem:[%s9 + $0x8] sm:$0xf]
  %v1976 = vld [vmem:[%s9 + $0xc] sm:$0xf]
  %v1977 = vld [vmem:[%s9 + $0x10] sm:$0xf]
  %v1978 = vld [vmem:[%s9 + $0x14] sm:$0xf]
  %v1979 = vld [vmem:[%s9 + $0x18] sm:$0xf]
  %v1980 = vld [vmem:[%s9 + $0x1c] sm:$0xf]
  %v1981 = vld [vmem:[%s9 + $0x20] sm:$0xf]
  %v1982 = vld [vmem:[%s9 + $0x24] sm:$0xf]
  %v1983 = vld [vmem:[%s9 + $0x28] sm:$0xf]
  %v1984 = vld [vmem:[%s9 + $0x2c] sm:$0xf]
  %v1985 = vld [vmem:[%s9 + $0x30] sm:$0xf]
  %v1986 = vld [vmem:[%s9 + $0x34] sm:$0xf]
  %v1987 = vld [vmem:[%s9 + $0x38] sm:$0xf]
  %v1988 = vld [vmem:[%s9 + $0x3c] sm:$0xf]
  %v1989 = vld [vmem:[%s9 + $0x40] sm:$0xf]
  %v1990 = vld [vmem:[%s9 + $0x44] sm:$0xf]
  %v1991 = vld [vmem:[%s9 + $0x48] sm:$0xf]
  %v1992 = vld [vmem:[%s9 + $0x4c] sm:$0xf]
  %v1993 = vld [vmem:[%s9 + $0x50] sm:$0xf]
  %v1994 = vld [vmem:[%s9 + $0x54] sm:$0xf]
  %v1995 = vld [vmem:[%s9 + $0x58] sm:$0xf]
  %v1996 = vld [vmem:[%s9 + $0x5c] sm:$0xf]
  %v1997 = vld [vmem:[%s9 + $0x60] sm:$0xf]
  %v1998 = vld [vmem:[%s9 + $0x64] sm:$0xf]
  %v1999 = vld [vmem:[%s9 + $0x68] sm:$0xf]
  %v2000 = vld [vmem:[%s9 + $0x6c] sm:$0xf]
  %v2001 = vld [vmem:[%s9 + $0x70] sm:$0xf]
  %v2002 = vld [vmem:[%s9 + $0x74] sm:$0xf]
  %v2003 = vld [vmem:[%s9 + $0x78] sm:$0xf]
  %v2004 = vld [vmem:[%s9 + $0x7c] sm:$0xf]
  %v2005 = vld [vmem:[%s9 + $0x80] sm:$0xf]
  %v2006 = vld [vmem:[%s9 + $0x84] sm:$0xf]
  %v2007 = vld [vmem:[%s9 + $0x88] sm:$0xf]
  %v2008 = vld [vmem:[%s9 + $0x8c] sm:$0xf]
  %v2009 = vld [vmem:[%s9 + $0x90] sm:$0xf]
  %v2010 = vld [vmem:[%s9 + $0x94] sm:$0xf]
  %v2011 = vld [vmem:[%s9 + $0x98] sm:$0xf]
  %v2012 = vld [vmem:[%s9 + $0x9c] sm:$0xf]
  %v2013 = vld [vmem:[%s9 + $0xa0] sm:$0xf]
  %v2014 = vld [vmem:[%s9 + $0xa4] sm:$0xf]
  %v2015 = vld [vmem:[%s9 + $0xa8] sm:$0xf]
  %v2016 = vld [vmem:[%s9 + $0xac] sm:$0xf]
  %v2017 = vld [vmem:[%s9 + $0xb0] sm:$0xf]
  %v2018 = vld [vmem:[%s9 + $0xb4] sm:$0xf]
  %v2019 = vld [vmem:[%s9 + $0xb8] sm:$0xf]
  %v2020 = vld [vmem:[%s9 + $0xbc] sm:$0xf]
  %v2021 = vld [vmem:[%s9 + $0xc0] sm:$0xf]
  %v2022 = vld [vmem:[%s9 + $0xc4] sm:$0xf]
  %v2023 = vld [vmem:[%s9 + $0xc8] sm:$0xf]
  %v2024 = vld [vmem:[%s9 + $0xcc] sm:$0xf]
  %v2025 = vld [vmem:[%s9 + $0xd0] sm:$0xf]
  %v2026 = vld [vmem:[%s9 + $0xd4] sm:$0xf]
  %v2027 = vld [vmem:[%s9 + $0xd8] sm:$0xf]
  %v2028 = vld [vmem:[%s9 + $0xdc] sm:$0xf]
  %v2029 = vld [vmem:[%s9 + $0xe0] sm:$0xf]
  %v2030 = vld [vmem:[%s9 + $0xe4] sm:$0xf]
  %v2031 = vld [vmem:[%s9 + $0xe8] sm:$0xf]
  %v2032 = vld [vmem:[%s9 + $0xec] sm:$0xf]
  %v2033 = vld [vmem:[%s9 + $0xf0] sm:$0xf]
  %v2034 = vld [vmem:[%s9 + $0xf4] sm:$0xf]
  %v2035 = vld [vmem:[%s9 + $0xf8] sm:$0xf]
  %v2036 = vld [vmem:[%s9 + $0xfc] sm:$0xf]
  %v2037 = vpack.c.bf16 %v1964, %v1964
  %v2038 = vld [vmem:[%s10] sm:$0xf]
  %vm2039 = vcmask 64512
  %v2041 = vsel %vm2039, %v2037, 0
  %v2044 = vsel %vm142, %v2038, 0
  %2046 = vmatprep.subr.bf16.mxu0 0
  %2047 = vmatpush1.bf16.msra.mxu0 %v2044
  %2048 = vmatprep.subr.bf16.mxu0 0
  %2049 = vmatpush1.bf16.msra.mxu0 0
  %2050 = vmatprep.subr.bf16.mxu0 0
  %2051 = vmatpush1.bf16.msra.mxu0 0
  %2052 = vmatprep.subr.bf16.mxu0 0
  %2053 = vmatpush1.bf16.msra.mxu0 0
  %2054 = vmatprep.subr.bf16.mxu0 0
  %2055 = vmatpush1.bf16.msra.mxu0 0
  %2056 = vmatprep.subr.bf16.mxu0 0
  %2057 = vmatpush1.bf16.msra.mxu0 0
  %2058 = vmatprep.subr.bf16.mxu0 0
  %2059 = vmatpush1.bf16.msra.mxu0 0
  %2060 = vmatprep.subr.bf16.mxu0 0
  %2061 = vmatpush1.bf16.msra.mxu0 0
  %2062 = vmatprep.subr.bf16.mxu0 0
  %2063 = vmatpush1.bf16.msra.mxu0 0
  %2064 = vmatprep.subr.bf16.mxu0 0
  %2065 = vmatpush1.bf16.msra.mxu0 0
  %2066 = vmatprep.subr.bf16.mxu0 0
  %2067 = vmatpush1.bf16.msra.mxu0 0
  %2068 = vmatprep.subr.bf16.mxu0 0
  %2069 = vmatpush1.bf16.msra.mxu0 0
  %2070 = vmatprep.subr.bf16.mxu0 0
  %2071 = vmatpush1.bf16.msra.mxu0 0
  %2072 = vmatprep.subr.bf16.mxu0 0
  %2073 = vmatpush1.bf16.msra.mxu0 0
  %2074 = vmatprep.subr.bf16.mxu0 0
  %2075 = vmatpush1.bf16.msra.mxu0 0
  %2076 = vmatprep.subr.bf16.mxu0 0
  %2077 = vmatpush1.bf16.msra.mxu0 0
  %2078 = vmatprep.mubr.bf16.mxu0 0
  %2079 = vmatmul.mubr.bf16.gmra.mrb[0].mxu0 %v2041
  %v2080 = vpop.f32.mrb[0].mxu0
  %v2081 = vadd.f32 0.0, %v2080
  %v2082 = vpop.f32.mrb[0].mxu0
  %v2083 = vpop.f32.mrb[0].mxu0
  %v2084 = vpop.f32.mrb[0].mxu0
  %2085 = vdwg.mxu0
  %v2150 = vunpack.c.l.b16 %v1973
  %v2151 = vunpack.c.l.b16 %v1974
  %v2152 = vunpack.c.l.b16 %v1975
  %v2153 = vunpack.c.l.b16 %v1976
  %v2154 = vunpack.c.l.b16 %v1977
  %v2155 = vunpack.c.l.b16 %v1978
  %v2156 = vunpack.c.l.b16 %v1979
  %v2157 = vunpack.c.l.b16 %v1980
  %v2158 = vunpack.c.l.b16 %v1981
  %v2159 = vunpack.c.l.b16 %v1982
  %v2160 = vunpack.c.l.b16 %v1983
  %v2161 = vunpack.c.l.b16 %v1984
  %v2162 = vunpack.c.l.b16 %v1985
  %v2163 = vunpack.c.l.b16 %v1986
  %v2164 = vunpack.c.l.b16 %v1987
  %v2165 = vunpack.c.l.b16 %v1988
  %v2166 = vunpack.c.l.b16 %v1989
  %v2167 = vunpack.c.l.b16 %v1990
  %v2168 = vunpack.c.l.b16 %v1991
  %v2169 = vunpack.c.l.b16 %v1992
  %v2170 = vunpack.c.l.b16 %v1993
  %v2171 = vunpack.c.l.b16 %v1994
  %v2172 = vunpack.c.l.b16 %v1995
  %v2173 = vunpack.c.l.b16 %v1996
  %v2174 = vunpack.c.l.b16 %v1997
  %v2175 = vunpack.c.l.b16 %v1998
  %v2176 = vunpack.c.l.b16 %v1999
  %v2177 = vunpack.c.l.b16 %v2000
  %v2178 = vunpack.c.l.b16 %v2001
  %v2179 = vunpack.c.l.b16 %v2002
  %v2180 = vunpack.c.l.b16 %v2003
  %v2181 = vunpack.c.l.b16 %v2004
  %v2182 = vunpack.c.l.b16 %v2005
  %v2183 = vunpack.c.l.b16 %v2006
  %v2184 = vunpack.c.l.b16 %v2007
  %v2185 = vunpack.c.l.b16 %v2008
  %v2186 = vunpack.c.l.b16 %v2009
  %v2187 = vunpack.c.l.b16 %v2010
  %v2188 = vunpack.c.l.b16 %v2011
  %v2189 = vunpack.c.l.b16 %v2012
  %v2190 = vunpack.c.l.b16 %v2013
  %v2191 = vunpack.c.l.b16 %v2014
  %v2192 = vunpack.c.l.b16 %v2015
  %v2193 = vunpack.c.l.b16 %v2016
  %v2194 = vunpack.c.l.b16 %v2017
  %v2195 = vunpack.c.l.b16 %v2018
  %v2196 = vunpack.c.l.b16 %v2019
  %v2197 = vunpack.c.l.b16 %v2020
  %v2198 = vunpack.c.l.b16 %v2021
  %v2199 = vunpack.c.l.b16 %v2022
  %v2200 = vunpack.c.l.b16 %v2023
  %v2201 = vunpack.c.l.b16 %v2024
  %v2202 = vunpack.c.l.b16 %v2025
  %v2203 = vunpack.c.l.b16 %v2026
  %v2204 = vunpack.c.l.b16 %v2027
  %v2205 = vunpack.c.l.b16 %v2028
  %v2206 = vunpack.c.l.b16 %v2029
  %v2207 = vunpack.c.l.b16 %v2030
  %v2208 = vunpack.c.l.b16 %v2031
  %v2209 = vunpack.c.l.b16 %v2032
  %v2210 = vunpack.c.l.b16 %v2033
  %v2211 = vunpack.c.l.b16 %v2034
  %v2212 = vunpack.c.l.b16 %v2035
  %v2213 = vunpack.c.l.b16 %v2036
  %v2214 = vpack.c.b16 %v2151, %v2150
  %v2215 = vpack.c.b16 %v2153, %v2152
  %v2216 = vpack.c.b16 %v2155, %v2154
  %v2217 = vpack.c.b16 %v2157, %v2156
  %v2218 = vpack.c.b16 %v2159, %v2158
  %v2219 = vpack.c.b16 %v2161, %v2160
  %v2220 = vpack.c.b16 %v2163, %v2162
  %v2221 = vpack.c.b16 %v2165, %v2164
  %v2222 = vpack.c.b16 %v2167, %v2166
  %v2223 = vpack.c.b16 %v2169, %v2168
  %v2224 = vpack.c.b16 %v2171, %v2170
  %v2225 = vpack.c.b16 %v2173, %v2172
  %v2226 = vpack.c.b16 %v2175, %v2174
  %v2227 = vpack.c.b16 %v2177, %v2176
  %v2228 = vpack.c.b16 %v2179, %v2178
  %v2229 = vpack.c.b16 %v2181, %v2180
  %v2230 = vpack.c.b16 %v2183, %v2182
  %v2231 = vpack.c.b16 %v2185, %v2184
  %v2232 = vpack.c.b16 %v2187, %v2186
  %v2233 = vpack.c.b16 %v2189, %v2188
  %v2234 = vpack.c.b16 %v2191, %v2190
  %v2235 = vpack.c.b16 %v2193, %v2192
  %v2236 = vpack.c.b16 %v2195, %v2194
  %v2237 = vpack.c.b16 %v2197, %v2196
  %v2238 = vpack.c.b16 %v2199, %v2198
  %v2239 = vpack.c.b16 %v2201, %v2200
  %v2240 = vpack.c.b16 %v2203, %v2202
  %v2241 = vpack.c.b16 %v2205, %v2204
  %v2242 = vpack.c.b16 %v2207, %v2206
  %v2243 = vpack.c.b16 %v2209, %v2208
  %v2244 = vpack.c.b16 %v2211, %v2210
  %v2245 = vpack.c.b16 %v2213, %v2212
  %2278 = vmatprep.subr.bf16.mxu0 0
  %2279 = vmatpush1.bf16.msra.mxu0 %v2214
  %2280 = vmatprep.subr.bf16.mxu0 0
  %2281 = vmatpush1.bf16.msra.mxu0 %v2215
  %2282 = vmatprep.subr.bf16.mxu0 0
  %2283 = vmatpush1.bf16.msra.mxu0 %v2216
  %2284 = vmatprep.subr.bf16.mxu0 0
  %2285 = vmatpush1.bf16.msra.mxu0 %v2217
  %2286 = vmatprep.subr.bf16.mxu0 0
  %2287 = vmatpush1.bf16.msra.mxu0 %v2218
  %2288 = vmatprep.subr.bf16.mxu0 0
  %2289 = vmatpush1.bf16.msra.mxu0 %v2219
  %2290 = vmatprep.subr.bf16.mxu0 0
  %2291 = vmatpush1.bf16.msra.mxu0 %v2220
  %2292 = vmatprep.subr.bf16.mxu0 0
  %2293 = vmatpush1.bf16.msra.mxu0 %v2221
  %2294 = vmatprep.subr.bf16.mxu0 0
  %2295 = vmatpush1.bf16.msra.mxu0 %v2222
  %2296 = vmatprep.subr.bf16.mxu0 0
  %2297 = vmatpush1.bf16.msra.mxu0 %v2223
  %2298 = vmatprep.subr.bf16.mxu0 0
  %2299 = vmatpush1.bf16.msra.mxu0 %v2224
  %2300 = vmatprep.subr.bf16.mxu0 0
  %2301 = vmatpush1.bf16.msra.mxu0 %v2225
  %2302 = vmatprep.subr.bf16.mxu0 0
  %2303 = vmatpush1.bf16.msra.mxu0 %v2226
  %2304 = vmatprep.subr.bf16.mxu0 0
  %2305 = vmatpush1.bf16.msra.mxu0 %v2227
  %2306 = vmatprep.subr.bf16.mxu0 0
  %2307 = vmatpush1.bf16.msra.mxu0 %v2228
  %2308 = vmatprep.subr.bf16.mxu0 0
  %2309 = vmatpush1.bf16.msra.mxu0 %v2229
  %2310 = vmatprep.mubr.bf16.mxu0 %v1970
  %2311 = vmatmul.mubr.bf16.gmra.mrb[0].mxu0 %v1969
  %v2312 = vpop.f32.mrb[0].mxu0
  %v2313 = vadd.f32 %v2081, %v2312
  %v2314 = vpop.f32.mrb[0].mxu0
  %v2315 = vpop.f32.mrb[0].mxu0
  %v2316 = vpop.f32.mrb[0].mxu0
  %2317 = vdwg.mxu0
  %2318 = vmatprep.subr.bf16.mxu0 0
  %2319 = vmatpush1.bf16.msra.mxu0 %v2230
  %2320 = vmatprep.subr.bf16.mxu0 0
  %2321 = vmatpush1.bf16.msra.mxu0 %v2231
  %2322 = vmatprep.subr.bf16.mxu0 0
  %2323 = vmatpush1.bf16.msra.mxu0 %v2232
  %2324 = vmatprep.subr.bf16.mxu0 0
  %2325 = vmatpush1.bf16.msra.mxu0 %v2233
  %2326 = vmatprep.subr.bf16.mxu0 0
  %2327 = vmatpush1.bf16.msra.mxu0 %v2234
  %2328 = vmatprep.subr.bf16.mxu0 0
  %2329 = vmatpush1.bf16.msra.mxu0 %v2235
  %2330 = vmatprep.subr.bf16.mxu0 0
  %2331 = vmatpush1.bf16.msra.mxu0 %v2236
  %2332 = vmatprep.subr.bf16.mxu0 0
  %2333 = vmatpush1.bf16.msra.mxu0 %v2237
  %2334 = vmatprep.subr.bf16.mxu0 0
  %2335 = vmatpush1.bf16.msra.mxu0 %v2238
  %2336 = vmatprep.subr.bf16.mxu0 0
  %2337 = vmatpush1.bf16.msra.mxu0 %v2239
  %2338 = vmatprep.subr.bf16.mxu0 0
  %2339 = vmatpush1.bf16.msra.mxu0 %v2240
  %2340 = vmatprep.subr.bf16.mxu0 0
  %2341 = vmatpush1.bf16.msra.mxu0 %v2241
  %2342 = vmatprep.subr.bf16.mxu0 0
  %2343 = vmatpush1.bf16.msra.mxu0 %v2242
  %2344 = vmatprep.subr.bf16.mxu0 0
  %2345 = vmatpush1.bf16.msra.mxu0 %v2243
  %2346 = vmatprep.subr.bf16.mxu0 0
  %2347 = vmatpush1.bf16.msra.mxu0 %v2244
  %2348 = vmatprep.subr.bf16.mxu0 0
  %2349 = vmatpush1.bf16.msra.mxu0 %v2245
  %2350 = vmatprep.mubr.bf16.mxu0 %v1972
  %2351 = vmatmul.mubr.bf16.gmra.mrb[0].mxu0 %v1971
  %v2352 = vpop.f32.mrb[0].mxu0
  %v2353 = vadd.f32 %v2313, %v2352
  %v2354 = vpop.f32.mrb[0].mxu0
  %v2355 = vpop.f32.mrb[0].mxu0
  %v2356 = vpop.f32.mrb[0].mxu0
  %2357 = vdwg.mxu0
  %v2358 = vld [vmem:[%s13] sm:$0x1]
  %v2360 = vlaneseq
  %v2361 = vshrl.u32 %v2360, 7
  %v2362 = vsub.s32 0, %v2361
  %v2363 = vrot.slane %v2358, %v2362
  %v2365 = vadd.f32 %v2353, %v2363
  %v2366 = vmax.f32 %v2365, 0.0
  %v2367 = vpack.c.bf16 %v2366, %v2366
  %v2368 = vld [vmem:[%s14] sm:$0xf]
  %v2369 = vld [vmem:[%s14 + $0x4] sm:$0xf]
  %v2370 = vld [vmem:[%s14 + $0x8] sm:$0xf]
  %v2371 = vld [vmem:[%s14 + $0xc] sm:$0xf]
  %v2372 = vld [vmem:[%s15] sm:$0x1]
  %v2374 = vlaneseq
  %v2375 = vshrl.u32 %v2374, 7
  %v2376 = vsub.s32 0, %v2375
  %v2377 = vrot.slane %v2372, %v2376
  %v2383 = vunpack.c.l.b16 %v2368
  %v2384 = vunpack.c.l.b16 %v2369
  %v2385 = vunpack.c.l.b16 %v2370
  %v2386 = vunpack.c.l.b16 %v2371
  %v2387 = vpack.c.b16 %v2384, %v2383
  %v2388 = vpack.c.b16 %v2386, %v2385
  %v2392 = vsel %vm890, %v2367, 0
  %2394 = vmatprep.subr.bf16.mxu0 0
  %2395 = vmatpush1.bf16.msra.mxu0 %v2387
  %2396 = vmatprep.subr.bf16.mxu0 0
  %2397 = vmatpush1.bf16.msra.mxu0 %v2388
  %2398 = vmatprep.subr.bf16.mxu0 0
  %2399 = vmatpush1.bf16.msra.mxu0 0
  %2400 = vmatprep.subr.bf16.mxu0 0
  %2401 = vmatpush1.bf16.msra.mxu0 0
  %2402 = vmatprep.subr.bf16.mxu0 0
  %2403 = vmatpush1.bf16.msra.mxu0 0
  %2404 = vmatprep.subr.bf16.mxu0 0
  %2405 = vmatpush1.bf16.msra.mxu0 0
  %2406 = vmatprep.subr.bf16.mxu0 0
  %2407 = vmatpush1.bf16.msra.mxu0 0
  %2408 = vmatprep.subr.bf16.mxu0 0
  %2409 = vmatpush1.bf16.msra.mxu0 0
  %2410 = vmatprep.subr.bf16.mxu0 0
  %2411 = vmatpush1.bf16.msra.mxu0 0
  %2412 = vmatprep.subr.bf16.mxu0 0
  %2413 = vmatpush1.bf16.msra.mxu0 0
  %2414 = vmatprep.subr.bf16.mxu0 0
  %2415 = vmatpush1.bf16.msra.mxu0 0
  %2416 = vmatprep.subr.bf16.mxu0 0
  %2417 = vmatpush1.bf16.msra.mxu0 0
  %2418 = vmatprep.subr.bf16.mxu0 0
  %2419 = vmatpush1.bf16.msra.mxu0 0
  %2420 = vmatprep.subr.bf16.mxu0 0
  %2421 = vmatpush1.bf16.msra.mxu0 0
  %2422 = vmatprep.subr.bf16.mxu0 0
  %2423 = vmatpush1.bf16.msra.mxu0 0
  %2424 = vmatprep.subr.bf16.mxu0 0
  %2425 = vmatpush1.bf16.msra.mxu0 0
  %2426 = vmatprep.mubr.bf16.mxu0 0
  %2427 = vmatmul.mubr.bf16.gmra.mrb[0].mxu0 %v2392
  %v2428 = vpop.f32.mrb[0].mxu0
  %v2429 = vadd.f32 %v2377, %v2428
  %v2430 = vpop.f32.mrb[0].mxu0
  %v2431 = vpop.f32.mrb[0].mxu0
  %v2432 = vpop.f32.mrb[0].mxu0
  %2433 = vdwg.mxu0
  %v2434 = vmax.f32 %v2429, 0.0
  %v2435 = vpack.c.bf16 %v2434, %v2434
  %v2436 = vld [vmem:[%s16] sm:$0xf]
  %v2437 = vld [vmem:[%s16 + $0x4] sm:$0xf]
  %v2438 = vld [vmem:[%s16 + $0x8] sm:$0xf]
  %v2439 = vld [vmem:[%s16 + $0xc] sm:$0xf]
  %v2440 = vld [vmem:[%s17] sm:$0x1]
  %v2442 = vlaneseq
  %v2443 = vshrl.u32 %v2442, 7
  %v2444 = vsub.s32 0, %v2443
  %v2445 = vrot.slane %v2440, %v2444
  %v2451 = vunpack.c.l.b16 %v2436
  %v2452 = vunpack.c.l.b16 %v2437
  %v2453 = vunpack.c.l.b16 %v2438
  %v2454 = vunpack.c.l.b16 %v2439
  %v2455 = vpack.c.b16 %v2452, %v2451
  %v2456 = vpack.c.b16 %v2454, %v2453
  %v2460 = vsel %vm890, %v2435, 0
  %2462 = vmatprep.subr.bf16.mxu0 0
  %2463 = vmatpush1.bf16.msra.mxu0 %v2455
  %2464 = vmatprep.subr.bf16.mxu0 0
  %2465 = vmatpush1.bf16.msra.mxu0 %v2456
  %2466 = vmatprep.subr.bf16.mxu0 0
  %2467 = vmatpush1.bf16.msra.mxu0 0
  %2468 = vmatprep.subr.bf16.mxu0 0
  %2469 = vmatpush1.bf16.msra.mxu0 0
  %2470 = vmatprep.subr.bf16.mxu0 0
  %2471 = vmatpush1.bf16.msra.mxu0 0
  %2472 = vmatprep.subr.bf16.mxu0 0
  %2473 = vmatpush1.bf16.msra.mxu0 0
  %2474 = vmatprep.subr.bf16.mxu0 0
  %2475 = vmatpush1.bf16.msra.mxu0 0
  %2476 = vmatprep.subr.bf16.mxu0 0
  %2477 = vmatpush1.bf16.msra.mxu0 0
  %2478 = vmatprep.subr.bf16.mxu0 0
  %2479 = vmatpush1.bf16.msra.mxu0 0
  %2480 = vmatprep.subr.bf16.mxu0 0
  %2481 = vmatpush1.bf16.msra.mxu0 0
  %2482 = vmatprep.subr.bf16.mxu0 0
  %2483 = vmatpush1.bf16.msra.mxu0 0
  %2484 = vmatprep.subr.bf16.mxu0 0
  %2485 = vmatpush1.bf16.msra.mxu0 0
  %2486 = vmatprep.subr.bf16.mxu0 0
  %2487 = vmatpush1.bf16.msra.mxu0 0
  %2488 = vmatprep.subr.bf16.mxu0 0
  %2489 = vmatpush1.bf16.msra.mxu0 0
  %2490 = vmatprep.subr.bf16.mxu0 0
  %2491 = vmatpush1.bf16.msra.mxu0 0
  %2492 = vmatprep.subr.bf16.mxu0 0
  %2493 = vmatpush1.bf16.msra.mxu0 0
  %2494 = vmatprep.mubr.bf16.mxu0 0
  %2495 = vmatmul.mubr.bf16.gmra.mrb[0].mxu0 %v2460
  %v2496 = vpop.f32.mrb[0].mxu0
  %v2497 = vadd.f32 %v2445, %v2496
  %v2498 = vpop.f32.mrb[0].mxu0
  %v2499 = vpop.f32.mrb[0].mxu0
  %v2500 = vpop.f32.mrb[0].mxu0
  %2501 = vdwg.mxu0
  %vm2502 = vcmask 7168
  %2503 = vst.msk [vmem:[%s18] sm:$0xff] %vm2502, %v2497
  %v2504 = vmax.f32 %v2497, -20.0
  %v2505 = vmin.f32 %v2504, 2.0
  %vm2506 = vcmask 15368
  %2507 = vst.msk [vmem:[%s18] sm:$0xff] %vm2506, %v2505
  // Predicated region
  $region74: #{tpu_custom_call.1} parent=0 // pred_check
    _
  $region75: #{tpu_custom_call.1} parent=0 // pred_check_branch
    %2509 = sbr.rel (0) target = $region77
  $region76: #{tpu_custom_call.1} parent=0 // pred_region
    _
  $region77: #{tpu_custom_call.1} parent=0 // pred_fallthru
    _
  // Predicated region
  $region78: #{tpu_custom_call.1} parent=0 // pred_check
    _
  $region79: #{tpu_custom_call.1} parent=0 // pred_check_branch
    %2511 = sbr.rel (0) target = $region81
  $region80: #{tpu_custom_call.1} parent=0 // pred_region
    _
  $region81: #{tpu_custom_call.1} parent=0 // pred_fallthru
    _

</llo_original>
